<compile_context>
chip_gen: v7x
topology: tpu7x:2x2x1
jax: 0.10.0
libtpu: 0.0.40
codegen_flags: <defaults>
</compile_context>

<pallas_src>
import functools

import jax
import jax.numpy as jnp
from jax.experimental import pallas as pl
from jax.experimental.pallas import tpu as pltpu


# --------------------------------------------------------------------------
# helpers
# --------------------------------------------------------------------------
def _round_up(x, m):
    return ((x + m - 1) // m) * m


def _vmem_budget_bytes():
    """Per-generation scoped-VMEM budget (~75% of physical capacity):
    ~96 MiB on v5e/v6e (128 MiB physical), ~48 MiB on v7x (64 MiB)."""
    cap = 64 * 1024 * 1024  # v7x-safe default if the query is unavailable
    try:
        cap = int(pltpu.get_tpu_info().vmem_capacity_bytes)
    except Exception:
        pass
    return int(cap * 3 // 4)


def _pick_row_tile(n_pad):
    """Largest 128-multiple row tile dividing n_pad that keeps >= 2 row tiles
    (v7x has 2 TensorCores; a single-tile row grid would idle one core)."""
    for c in (512, 256, 128):
        if n_pad % c == 0 and n_pad // c >= 2:
            return c
    return n_pad


def _pick_tile(n_pad, candidates):
    for c in candidates:
        if n_pad % c == 0:
            return c
    return n_pad


def _pick_tk(n_pad, tm, f_out, cb, ob, budget):
    """Prefer tk == n_pad (support fully VMEM-resident, no k reduction grid);
    otherwise the largest reduction tile that fits the VMEM budget."""
    for tk in (n_pad, 4096, 2048, 1024, 512, 256, 128):
        if tk > n_pad or n_pad % tk:
            continue
        need = (2 * tm * tk * cb        # adj slab, double buffered
                + 2 * tk * f_out * cb   # support block (+ pipeline buffer)
                + tm * f_out * 4        # f32 accumulator scratch
                + 2 * tm * f_out * ob   # output tile, double buffered
                + 4 * f_out)            # bias
        if need <= (budget * 7) // 10:
            return tk
    return 128


def _fused_fits(n_pad, f0, f1, f2, f3, cb, budget):
    fmax = max(f1, f2, f3)
    need = (n_pad * n_pad * cb                      # adj (resident, read once)
            + n_pad * f0 * cb                       # x
            + (f0 * f1 + f1 * f2 + f2 * f3) * cb    # weights
            + n_pad * f3 * 4                        # output (f32)
            + 3 * n_pad * fmax * 4)                 # h / support temporaries
    return need <= (budget * 7) // 10               # leave compiler headroom


# --------------------------------------------------------------------------
# fused 3-layer path: everything VMEM resident, adj read from HBM once
# --------------------------------------------------------------------------
def _fused3_kernel(x_ref, adj_ref, w1_ref, b1_ref, w2_ref, b2_ref, w3_ref,
                   b3_ref, o_ref):
    cdt = x_ref.dtype
    adj = adj_ref[...]

    def conv(h, w_ref, b_ref, relu):
        s = jnp.dot(h, w_ref[...], preferred_element_type=jnp.float32)
        out = jnp.dot(adj, s.astype(cdt), preferred_element_type=jnp.float32)
        out = out + b_ref[...].astype(jnp.float32)
        if relu:
            out = jnp.maximum(out, 0.0)
        return out

    h = conv(x_ref[...], w1_ref, b1_ref, True).astype(cdt)
    # F.dropout(..., training=False) -> identity in inference mode.
    h = conv(h, w2_ref, b2_ref, True).astype(cdt)
    o_ref[...] = conv(h, w3_ref, b3_ref, False).astype(o_ref.dtype)


def _fused_forward(xp, adjp, w1p, b1p, w2p, b2p, w3p, b3p, *, out_dtype,
                   vmem_limit):
    n_pad = adjp.shape[0]
    f0, f1 = w1p.shape
    f2 = w2p.shape[1]
    f3 = w3p.shape[1]
    isz = xp.dtype.itemsize
    cost = pl.CostEstimate(
        flops=2 * n_pad * (f0 * f1 + n_pad * f1 + f1 * f2 + n_pad * f2
                           + f2 * f3 + n_pad * f3),
        transcendentals=0,
        bytes_accessed=(adjp.size + xp.size + w1p.size + w2p.size + w3p.size)
        * isz + n_pad * f3 * jnp.dtype(out_dtype).itemsize,
    )
    return pl.pallas_call(
        _fused3_kernel,
        out_shape=jax.ShapeDtypeStruct((n_pad, f3), out_dtype),
        compiler_params=pltpu.CompilerParams(vmem_limit_bytes=vmem_limit),
        cost_estimate=cost,
    )(xp, adjp, w1p, b1p, w2p, b2p, w3p, b3p)


# --------------------------------------------------------------------------
# tiled per-layer path
# --------------------------------------------------------------------------
def _support_kernel(x_ref, w_ref, o_ref):
    o_ref[...] = jnp.dot(x_ref[...], w_ref[...],
                         preferred_element_type=jnp.float32).astype(o_ref.dtype)


def _support(x, w, *, tm, out_dtype, vmem_limit):
    n, f_in = x.shape
    f_out = w.shape[1]
    cost = pl.CostEstimate(
        flops=2 * n * f_in * f_out, transcendentals=0,
        bytes_accessed=(x.size * x.dtype.itemsize + w.size * w.dtype.itemsize
                        + n * f_out * jnp.dtype(out_dtype).itemsize))
    return pl.pallas_call(
        _support_kernel,
        out_shape=jax.ShapeDtypeStruct((n, f_out), out_dtype),
        grid=(n // tm,),
        in_specs=[
            pl.BlockSpec((tm, f_in), lambda i: (i, 0)),       # x row tile
            pl.BlockSpec((f_in, f_out), lambda i: (0, 0)),    # W resident
        ],
        out_specs=pl.BlockSpec((tm, f_out), lambda i: (i, 0)),
        compiler_params=pltpu.CompilerParams(
            dimension_semantics=("parallel",),
            vmem_limit_bytes=vmem_limit),
        cost_estimate=cost,
    )(x, w)


def _aggregate_kernel(adj_ref, s_ref, b_ref, o_ref, acc_ref, *, apply_relu):
    k = pl.program_id(1)

    @pl.when(k == 0)
    def _():
        # bias folded into accumulator init (saves an epilogue full-tile add)
        acc_ref[...] = jnp.zeros_like(acc_ref) + b_ref[...].astype(jnp.float32)

    acc_ref[...] += jnp.dot(adj_ref[...], s_ref[...],
                            preferred_element_type=jnp.float32)

    @pl.when(k == pl.num_programs(1) - 1)
    def _():
        out = acc_ref[...]
        if apply_relu:
            out = jnp.maximum(out, 0.0)
        o_ref[...] = out.astype(o_ref.dtype)


def _aggregate(adj, support, b, *, tm, tk, apply_relu, out_dtype, vmem_limit):
    n = adj.shape[0]
    f_out = support.shape[1]
    n_support_reads = 1 if tk == n else (n // tm)
    cost = pl.CostEstimate(
        flops=2 * n * n * f_out, transcendentals=0,
        bytes_accessed=(adj.size * adj.dtype.itemsize
                        + n_support_reads * support.size * support.dtype.itemsize
                        + n * f_out * jnp.dtype(out_dtype).itemsize))
    kernel = functools.partial(_aggregate_kernel, apply_relu=apply_relu)
    return pl.pallas_call(
        kernel,
        out_shape=jax.ShapeDtypeStruct((n, f_out), out_dtype),
        grid=(n // tm, n // tk),
        in_specs=[
            pl.BlockSpec((tm, tk), lambda i, k: (i, k)),      # adj slab (streamed)
            pl.BlockSpec((tk, f_out), lambda i, k: (k, 0)),   # support (resident if tk==n)
            pl.BlockSpec((1, f_out), lambda i, k: (0, 0)),    # bias (resident)
        ],
        out_specs=pl.BlockSpec((tm, f_out), lambda i, k: (i, 0)),
        scratch_shapes=[pltpu.VMEM((tm, f_out), jnp.float32)],
        compiler_params=pltpu.CompilerParams(
            dimension_semantics=("parallel", "arbitrary"),
            vmem_limit_bytes=vmem_limit),
        cost_estimate=cost,
    )(adj, support, b)


# --------------------------------------------------------------------------
# Full 3-layer forward (inference mode)
# --------------------------------------------------------------------------
def gcn_vanilla_3_layers_forward(x, adj, params, dropout_rate=0.5,
                                 training=False, compute_dtype=jnp.bfloat16,
                                 force_tiled=False):
    """Reproduces GCN_vanilla_3_layers.forward (inference mode)."""
    if training and dropout_rate > 0.0:
        # TODO(synk): training-mode dropout via pltpu.prng_* is not implemented.
        raise NotImplementedError(
            "training-mode dropout is not implemented in the Pallas kernels")

    (w1, b1), (w2, b2), (w3, b3) = params
    n, nfeat = x.shape
    nhid = w3.shape[1]
    cb = jnp.dtype(compute_dtype).itemsize
    budget = _vmem_budget_bytes()

    # ---- pad to (8,128)-aligned, lane-dense shapes -------------------------
    n_pad = _round_up(max(n, 8), 256)
    f0 = _round_up(nfeat, 128)
    f1 = _round_up(w1.shape[1], 128)
    f2 = _round_up(w2.shape[1], 128)
    f3 = _round_up(nhid, 128)

    def pad2(a, r, c):
        a = jnp.asarray(a)
        if a.ndim == 1:
            a = a.reshape(1, -1)
        return jnp.pad(a, ((0, r - a.shape[0]), (0, c - a.shape[1])))

    xp = pad2(x, n_pad, f0).astype(compute_dtype)
    adjp = pad2(adj, n_pad, n_pad).astype(compute_dtype)
    w1p = pad2(w1, f0, f1).astype(compute_dtype)
    w2p = pad2(w2, f1, f2).astype(compute_dtype)
    w3p = pad2(w3, f2, f3).astype(compute_dtype)
    b1p = pad2(b1, 1, f1).astype(jnp.float32)
    b2p = pad2(b2, 1, f2).astype(jnp.float32)
    b3p = pad2(b3, 1, f3).astype(jnp.float32)

    # ---- fused path: adj + intermediates resident, adj read from HBM once --
    if not force_tiled and _fused_fits(n_pad, f0, f1, f2, f3, cb, budget):
        emb = _fused_forward(xp, adjp, w1p, b1p, w2p, b2p, w3p, b3p,
                             out_dtype=jnp.float32, vmem_limit=budget)
        return emb[:n, :nhid]

    # ---- tiled per-layer path -----------------------------------------------
    tm = _pick_row_tile(n_pad)                    # aggregate output row tile
    tm_s = _pick_tile(n_pad, (512, 256, 128))     # row tile for x @ W

    def layer(h_in, w, b, relu, out_dt):
        f_out = w.shape[1]
        s = _support(h_in, w, tm=tm_s, out_dtype=compute_dtype,
                     vmem_limit=budget)
        tk = _pick_tk(n_pad, tm, f_out, cb, jnp.dtype(out_dt).itemsize, budget)
        return _aggregate(adjp, s, b, tm=tm, tk=tk, apply_relu=relu,
                          out_dtype=out_dt, vmem_limit=budget)

    h = layer(xp, w1p, b1p, True, compute_dtype)
    # F.dropout(h, dropout, training=False) -> identity in inference mode.
    h = layer(h, w2p, b2p, True, compute_dtype)
    emb = layer(h, w3p, b3p, False, jnp.float32)
    return emb[:n, :nhid]


def init_params(key, nfeat, nhid):
    """GraphConvolution init: uniform(-1/sqrt(f_out), 1/sqrt(f_out))."""
    dims = [(nfeat, 256), (256, 128), (128, nhid)]
    params = []
    for (fi, fo) in dims:
        key, kw, kb = jax.random.split(key, 3)
        stdv = 1.0 / jnp.sqrt(jnp.float32(fo))
        w = jax.random.uniform(kw, (fi, fo), jnp.float32, -stdv, stdv)
        b = jax.random.uniform(kb, (1, fo), jnp.float32, -stdv, stdv)
        params.append((w, b))
    return params


if __name__ == "__main__":
    key = jax.random.PRNGKey(0)
    n_nodes, nfeat, nhid = 8, 32, 16

    kx, kadj, kparams = jax.random.split(key, 3)
    x = jax.random.normal(kx, (n_nodes, nfeat), jnp.float32)

    # Symmetric row-normalized adjacency with self-loops (typical GCN input).
    a = (jax.random.uniform(kadj, (n_nodes, n_nodes)) > 0.5).astype(jnp.float32)
    a = jnp.maximum(a, a.T) + jnp.eye(n_nodes, dtype=jnp.float32)
    adj = a / jnp.sum(a, axis=1, keepdims=True)

    params = init_params(kparams, nfeat, nhid)

    # Reference in plain JAX (f32).
    def ref_forward(x, adj, params):
        (w1, b1), (w2, b2), (w3, b3) = params
        h = jnp.maximum(adj @ (x @ w1) + b1, 0.0)
        h = jnp.maximum(adj @ (h @ w2) + b2, 0.0)
        return adj @ (h @ w3) + b3

    ref = ref_forward(x, adj, params)

    # Fused path, f32 compute: exact-ish match against the reference.
    emb_f32 = jax.block_until_ready(
        gcn_vanilla_3_layers_forward(x, adj, params, compute_dtype=jnp.float32))
    assert emb_f32.shape == (n_nodes, nhid)
    assert jnp.allclose(emb_f32, ref, atol=1e-4, rtol=1e-4)

    # Fused path, bf16 MXU compute (production default): loose tolerance.
    emb_bf16 = jax.block_until_ready(
        gcn_vanilla_3_layers_forward(x, adj, params, compute_dtype=jnp.bfloat16))
    assert emb_bf16.shape == (n_nodes, nhid)
    assert jnp.allclose(emb_bf16, ref, atol=5e-2, rtol=5e-2)

    # Tiled per-layer path (adj row-slabs streamed, support VMEM-resident).
    emb_tiled = jax.block_until_ready(
        gcn_vanilla_3_layers_forward(x, adj, params, compute_dtype=jnp.float32,
                                     force_tiled=True))
    assert emb_tiled.shape == (n_nodes, nhid)
    assert jnp.allclose(emb_tiled, ref, atol=1e-4, rtol=1e-4)

    print("KERNEL_OK")
</pallas_src>

<mosaic_0001>
module attributes {stable_mosaic.version = 11 : i64} {
  func.func @_fused3_kernel(%arg0: memref<256x128xf32, #tpu.memory_space<vmem>>, %arg1: memref<256x256xf32, #tpu.memory_space<vmem>>, %arg2: memref<128x256xf32, #tpu.memory_space<vmem>>, %arg3: memref<1x256xf32, #tpu.memory_space<vmem>>, %arg4: memref<256x128xf32, #tpu.memory_space<vmem>>, %arg5: memref<1x128xf32, #tpu.memory_space<vmem>>, %arg6: memref<128x128xf32, #tpu.memory_space<vmem>>, %arg7: memref<1x128xf32, #tpu.memory_space<vmem>>, %arg8: memref<256x128xf32, #tpu.memory_space<vmem>>) attributes {dimension_semantics = [], scalar_prefetch = 0 : i64, scratch_operands = 0 : i64, tpu.core_type = #tpu.core_type<tc>} {
    %c0 = arith.constant 0 : index
    %c0_0 = arith.constant 0 : index
    %0 = vector.load %arg1[%c0, %c0_0] : memref<256x256xf32, #tpu.memory_space<vmem>>, vector<256x256xf32>
    %c0_1 = arith.constant 0 : index
    %c0_2 = arith.constant 0 : index
    %1 = vector.load %arg0[%c0_1, %c0_2] : memref<256x128xf32, #tpu.memory_space<vmem>>, vector<256x128xf32>
    %c0_3 = arith.constant 0 : index
    %c0_4 = arith.constant 0 : index
    %2 = vector.load %arg2[%c0_3, %c0_4] : memref<128x256xf32, #tpu.memory_space<vmem>>, vector<128x256xf32>
    %cst = arith.constant dense<0.000000e+00> : vector<256x256xf32>
    %3 = tpu.matmul %1, %2, %cst {dimension_numbers = #tpu.dot_dimension_numbers<[1], [0], [0], [1], [0, 0, 1, 1], [], []>} : vector<256x128xf32>, vector<128x256xf32>, vector<256x256xf32> -> vector<256x256xf32>
    %cst_5 = arith.constant dense<0.000000e+00> : vector<256x256xf32>
    %4 = tpu.matmul %0, %3, %cst_5 {dimension_numbers = #tpu.dot_dimension_numbers<[1], [0], [0], [1], [0, 0, 1, 1], [], []>} : vector<256x256xf32>, vector<256x256xf32>, vector<256x256xf32> -> vector<256x256xf32>
    %c0_6 = arith.constant 0 : index
    %c0_7 = arith.constant 0 : index
    %5 = vector.load %arg3[%c0_6, %c0_7] : memref<1x256xf32, #tpu.memory_space<vmem>>, vector<1x256xf32>
    %6 = vector.broadcast %5 : vector<1x256xf32> to vector<256x256xf32>
    %7 = arith.addf %4, %6 : vector<256x256xf32>
    %cst_8 = arith.constant 0.000000e+00 : f32
    %8 = vector.broadcast %cst_8 : f32 to vector<256x256xf32>
    %9 = arith.maximumf %7, %8 : vector<256x256xf32>
    %c0_9 = arith.constant 0 : index
    %c0_10 = arith.constant 0 : index
    %10 = vector.load %arg4[%c0_9, %c0_10] : memref<256x128xf32, #tpu.memory_space<vmem>>, vector<256x128xf32>
    %cst_11 = arith.constant dense<0.000000e+00> : vector<256x128xf32>
    %11 = tpu.matmul %9, %10, %cst_11 {dimension_numbers = #tpu.dot_dimension_numbers<[1], [0], [0], [1], [0, 0, 1, 1], [], []>} : vector<256x256xf32>, vector<256x128xf32>, vector<256x128xf32> -> vector<256x128xf32>
    %cst_12 = arith.constant dense<0.000000e+00> : vector<256x128xf32>
    %12 = tpu.matmul %0, %11, %cst_12 {dimension_numbers = #tpu.dot_dimension_numbers<[1], [0], [0], [1], [0, 0, 1, 1], [], []>} : vector<256x256xf32>, vector<256x128xf32>, vector<256x128xf32> -> vector<256x128xf32>
    %c0_13 = arith.constant 0 : index
    %c0_14 = arith.constant 0 : index
    %13 = vector.load %arg5[%c0_13, %c0_14] : memref<1x128xf32, #tpu.memory_space<vmem>>, vector<1x128xf32>
    %14 = vector.broadcast %13 : vector<1x128xf32> to vector<256x128xf32>
    %15 = arith.addf %12, %14 : vector<256x128xf32>
    %cst_15 = arith.constant 0.000000e+00 : f32
    %16 = vector.broadcast %cst_15 : f32 to vector<256x128xf32>
    %17 = arith.maximumf %15, %16 : vector<256x128xf32>
    %c0_16 = arith.constant 0 : index
    %c0_17 = arith.constant 0 : index
    %18 = vector.load %arg6[%c0_16, %c0_17] : memref<128x128xf32, #tpu.memory_space<vmem>>, vector<128x128xf32>
    %cst_18 = arith.constant dense<0.000000e+00> : vector<256x128xf32>
    %19 = tpu.matmul %17, %18, %cst_18 {dimension_numbers = #tpu.dot_dimension_numbers<[1], [0], [0], [1], [0, 0, 1, 1], [], []>} : vector<256x128xf32>, vector<128x128xf32>, vector<256x128xf32> -> vector<256x128xf32>
    %cst_19 = arith.constant dense<0.000000e+00> : vector<256x128xf32>
    %20 = tpu.matmul %0, %19, %cst_19 {dimension_numbers = #tpu.dot_dimension_numbers<[1], [0], [0], [1], [0, 0, 1, 1], [], []>} : vector<256x256xf32>, vector<256x128xf32>, vector<256x128xf32> -> vector<256x128xf32>
    %c0_20 = arith.constant 0 : index
    %c0_21 = arith.constant 0 : index
    %21 = vector.load %arg7[%c0_20, %c0_21] : memref<1x128xf32, #tpu.memory_space<vmem>>, vector<1x128xf32>
    %22 = vector.broadcast %21 : vector<1x128xf32> to vector<256x128xf32>
    %23 = arith.addf %20, %22 : vector<256x128xf32>
    %c0_22 = arith.constant 0 : index
    %c0_23 = arith.constant 0 : index
    %24 = vector.load %arg8[%c0_22, %c0_23] : memref<256x128xf32, #tpu.memory_space<vmem>>, vector<256x128xf32>
    tpu.vector_store %arg8[%c0_22, %c0_23], %23 {strides = array<i32>} : memref<256x128xf32, #tpu.memory_space<vmem>>, vector<256x128xf32>,
    return
  }
}

</mosaic_0001>

<llo_original>
// kernel: tpu_custom_call.1
$region0: #{tpu_custom_call.1}
  #allocation0 [shape = 'u32[]', space=smem, size = 0x4, offset = 0x4, fixed_abs, tag = 'smem constant byte address 0x4 - core index']
  #allocation1 [shape = 'u32[144,128]{1,0:T(1,128)}', space=vmem, size = 0x12000, scoped, tag = 'internal scratch']
  %s0 = inlined_call_operand.hbm [shape: f32[256,128], index: 0, kind: input, shape index: {}]
  %s1 = inlined_call_operand.hbm [shape: f32[256,256], index: 1, kind: input, shape index: {}]
  %s2 = inlined_call_operand.hbm [shape: f32[128,256], index: 2, kind: input, shape index: {}]
  %s3 = inlined_call_operand.vmem [shape: f32[1,256], index: 3, kind: input, shape index: {}]
  %s4 = inlined_call_operand.hbm [shape: f32[256,128], index: 4, kind: input, shape index: {}]
  %s5 = inlined_call_operand.vmem [shape: f32[1,128], index: 5, kind: input, shape index: {}]
  %s6 = inlined_call_operand.hbm [shape: f32[128,128], index: 6, kind: input, shape index: {}]
  %s7 = inlined_call_operand.vmem [shape: f32[1,128], index: 7, kind: input, shape index: {}]
  %s8 = inlined_call_operand.hbm [shape: f32[256,128], index: 8, kind: output, shape index: {}]
  %s9 = sld [smem:[#allocation0]]
  $region62: #{tpu_custom_call.1} parent=0
    _
  %s11 = ssub.s32 1, %s9
  %s12 = scalar_select 0, %s11, %s9
  $region1: #{tpu_custom_call.1} parent=0
    #allocation2 [shape = 'u8[131072]{0}', space=vmem, size = 0x20000, scoped, tag = 'input window, operand 0, single buffered']
    #allocation3 [shape = 's32[1]{0}', space=sflag, size = 0x4, scoped, tag = 'scoped memory for tpu_custom_call.1']
    #allocation4 [shape = 's32[1]{0}', space=sflag, size = 0x4, scoped, tag = 'scoped memory for tpu_custom_call.1']
    #allocation5 [shape = 'u8[262144]{0}', space=vmem, size = 0x40000, scoped, tag = 'input window, operand 1, single buffered']
    #allocation6 [shape = 's32[1]{0}', space=sflag, size = 0x4, scoped, tag = 'scoped memory for tpu_custom_call.1']
    #allocation7 [shape = 'u8[131072]{0}', space=vmem, size = 0x20000, scoped, tag = 'input window, operand 2, single buffered']
    #allocation8 [shape = 'u8[131072]{0}', space=vmem, size = 0x20000, scoped, tag = 'input window, operand 4, single buffered']
    #allocation9 [shape = 's32[1]{0}', space=sflag, size = 0x4, scoped, tag = 'scoped memory for tpu_custom_call.1']
    #allocation10 [shape = 'u8[65536]{0}', space=vmem, size = 0x10000, scoped, tag = 'input window, operand 6, single buffered']
    #allocation11 [shape = 'u8[131072]{0}', space=vmem, size = 0x20000, scoped, tag = 'output window, operand 0, single buffered']
    %13 = vsyncpa [#allocation3], 0
    %14 = vsyncpa [#allocation6], 0
    %15 = vsyncpa [#allocation9], 0
    %16 = vsyncpa [#allocation4], 0
    // Predicated region
    $region2: #{tpu_custom_call.1} parent=1 // pred_check
      _
    $region3: #{tpu_custom_call.1} parent=1 // pred_check_branch
      %18 = sbr.rel (0) target = $region5
    $region4: #{tpu_custom_call.1} parent=1 // pred_region
      %s20 = ssub.s32 4096, 4096
      %21 = vsyncadd [#allocation3], %s20
      %s22 = sshll.u32 [#allocation2], 4
      %s23 = int_to_ptr.vmem [resolvable:$true] %s22
      %28 = dma.hbm_to_vmem [thread:$0]  %s0, 4096, %s23, [#allocation3], 128, 128, 8
    $region5: #{tpu_custom_call.1} parent=1 // pred_fallthru
      _
    // Predicated region
    $region6: #{tpu_custom_call.1} parent=1 // pred_check
      _
    $region7: #{tpu_custom_call.1} parent=1 // pred_check_branch
      %30 = sbr.rel (0) target = $region9
    $region8: #{tpu_custom_call.1} parent=1 // pred_region
      %s32 = ssub.s32 8192, 8192
      %33 = vsyncadd [#allocation6], %s32
      %s34 = sshll.u32 [#allocation5], 4
      %s35 = int_to_ptr.vmem [resolvable:$true] %s34
      %40 = dma.hbm_to_vmem [thread:$0]  %s1, 8192, %s35, [#allocation6], 256, 256, 16
    $region9: #{tpu_custom_call.1} parent=1 // pred_fallthru
      _
    // Predicated region
    $region10: #{tpu_custom_call.1} parent=1 // pred_check
      _
    $region11: #{tpu_custom_call.1} parent=1 // pred_check_branch
      %42 = sbr.rel (0) target = $region13
    $region12: #{tpu_custom_call.1} parent=1 // pred_region
      %s44 = ssub.s32 4096, 4096
      %45 = vsyncadd [#allocation6], %s44
      %s46 = sshll.u32 [#allocation7], 4
      %s47 = int_to_ptr.vmem [resolvable:$true] %s46
      %52 = dma.hbm_to_vmem [thread:$0]  %s2, 4096, %s47, [#allocation6], 256, 256, 16
    $region13: #{tpu_custom_call.1} parent=1 // pred_fallthru
      _
    // Predicated region
    $region14: #{tpu_custom_call.1} parent=1 // pred_check
      _
    $region15: #{tpu_custom_call.1} parent=1 // pred_check_branch
      %54 = sbr.rel (0) target = $region17
    $region16: #{tpu_custom_call.1} parent=1 // pred_region
      _
    $region17: #{tpu_custom_call.1} parent=1 // pred_fallthru
      _
    // Predicated region
    $region18: #{tpu_custom_call.1} parent=1 // pred_check
      _
    $region19: #{tpu_custom_call.1} parent=1 // pred_check_branch
      %56 = sbr.rel (0) target = $region21
    $region20: #{tpu_custom_call.1} parent=1 // pred_region
      %s58 = ssub.s32 4096, 4096
      %59 = vsyncadd [#allocation9], %s58
      %s60 = sshll.u32 [#allocation8], 4
      %s61 = int_to_ptr.vmem [resolvable:$true] %s60
      %66 = dma.hbm_to_vmem [thread:$0]  %s4, 4096, %s61, [#allocation9], 128, 128, 8
    $region21: #{tpu_custom_call.1} parent=1 // pred_fallthru
      _
    // Predicated region
    $region22: #{tpu_custom_call.1} parent=1 // pred_check
      _
    $region23: #{tpu_custom_call.1} parent=1 // pred_check_branch
      %68 = sbr.rel (0) target = $region25
    $region24: #{tpu_custom_call.1} parent=1 // pred_region
      _
    $region25: #{tpu_custom_call.1} parent=1 // pred_fallthru
      _
    // Predicated region
    $region26: #{tpu_custom_call.1} parent=1 // pred_check
      _
    $region27: #{tpu_custom_call.1} parent=1 // pred_check_branch
      %70 = sbr.rel (0) target = $region29
    $region28: #{tpu_custom_call.1} parent=1 // pred_region
      %s72 = ssub.s32 2048, 2048
      %73 = vsyncadd [#allocation9], %s72
      %s74 = sshll.u32 [#allocation10], 4
      %s75 = int_to_ptr.vmem [resolvable:$true] %s74
      %80 = dma.hbm_to_vmem [thread:$0]  %s6, 2048, %s75, [#allocation9], 128, 128, 8
    $region29: #{tpu_custom_call.1} parent=1 // pred_fallthru
      _
    // Predicated region
    $region30: #{tpu_custom_call.1} parent=1 // pred_check
      _
    $region31: #{tpu_custom_call.1} parent=1 // pred_check_branch
      %82 = sbr.rel (0) target = $region33
    $region32: #{tpu_custom_call.1} parent=1 // pred_region
      _
    $region33: #{tpu_custom_call.1} parent=1 // pred_fallthru
      _
    // Predicated region
    $region34: #{tpu_custom_call.1} parent=1 // pred_check
      _
    $region35: #{tpu_custom_call.1} parent=1 // pred_check_branch
      %84 = sbr.rel (0) target = $region37
    $region36: #{tpu_custom_call.1} parent=1 // pred_region
      %85 = dma.done [#allocation3], 4096
    $region37: #{tpu_custom_call.1} parent=1 // pred_fallthru
      _
    // Predicated region
    $region38: #{tpu_custom_call.1} parent=1 // pred_check
      _
    $region39: #{tpu_custom_call.1} parent=1 // pred_check_branch
      %87 = sbr.rel (0) target = $region41
    $region40: #{tpu_custom_call.1} parent=1 // pred_region
      %88 = dma.done [#allocation6], 8192
    $region41: #{tpu_custom_call.1} parent=1 // pred_fallthru
      _
    // Predicated region
    $region42: #{tpu_custom_call.1} parent=1 // pred_check
      _
    $region43: #{tpu_custom_call.1} parent=1 // pred_check_branch
      %90 = sbr.rel (0) target = $region45
    $region44: #{tpu_custom_call.1} parent=1 // pred_region
      %91 = dma.done [#allocation6], 4096
    $region45: #{tpu_custom_call.1} parent=1 // pred_fallthru
      _
    // Predicated region
    $region46: #{tpu_custom_call.1} parent=1 // pred_check
      _
    $region47: #{tpu_custom_call.1} parent=1 // pred_check_branch
      %93 = sbr.rel (0) target = $region49
    $region48: #{tpu_custom_call.1} parent=1 // pred_region
      %94 = dma.done [#allocation9], 4096
    $region49: #{tpu_custom_call.1} parent=1 // pred_fallthru
      _
    // Predicated region
    $region50: #{tpu_custom_call.1} parent=1 // pred_check
      _
    $region51: #{tpu_custom_call.1} parent=1 // pred_check_branch
      %96 = sbr.rel (0) target = $region53
    $region52: #{tpu_custom_call.1} parent=1 // pred_region
      %97 = dma.done [#allocation9], 2048
    $region53: #{tpu_custom_call.1} parent=1 // pred_fallthru
      _
    %v98 = vld [vmem:[#allocation5] sm:$0xff]
    %v99 = vld [vmem:[#allocation5 + $0x8] sm:$0xff]
    %v100 = vld [vmem:[#allocation5 + $0x10] sm:$0xff]
    %v101 = vld [vmem:[#allocation5 + $0x18] sm:$0xff]
    %v102 = vld [vmem:[#allocation5 + $0x20] sm:$0xff]
    %v103 = vld [vmem:[#allocation5 + $0x28] sm:$0xff]
    %v104 = vld [vmem:[#allocation5 + $0x30] sm:$0xff]
    %v105 = vld [vmem:[#allocation5 + $0x38] sm:$0xff]
    %v106 = vld [vmem:[#allocation5 + $0x40] sm:$0xff]
    %v107 = vld [vmem:[#allocation5 + $0x48] sm:$0xff]
    %v108 = vld [vmem:[#allocation5 + $0x50] sm:$0xff]
    %v109 = vld [vmem:[#allocation5 + $0x58] sm:$0xff]
    %v110 = vld [vmem:[#allocation5 + $0x60] sm:$0xff]
    %v111 = vld [vmem:[#allocation5 + $0x68] sm:$0xff]
    %v112 = vld [vmem:[#allocation5 + $0x70] sm:$0xff]
    %v113 = vld [vmem:[#allocation5 + $0x78] sm:$0xff]
    %v114 = vld [vmem:[#allocation5 + $0x80] sm:$0xff]
    %v115 = vld [vmem:[#allocation5 + $0x88] sm:$0xff]
    %v116 = vld [vmem:[#allocation5 + $0x90] sm:$0xff]
    %v117 = vld [vmem:[#allocation5 + $0x98] sm:$0xff]
    %v118 = vld [vmem:[#allocation5 + $0xa0] sm:$0xff]
    %v119 = vld [vmem:[#allocation5 + $0xa8] sm:$0xff]
    %v120 = vld [vmem:[#allocation5 + $0xb0] sm:$0xff]
    %v121 = vld [vmem:[#allocation5 + $0xb8] sm:$0xff]
    %v122 = vld [vmem:[#allocation5 + $0xc0] sm:$0xff]
    %v123 = vld [vmem:[#allocation5 + $0xc8] sm:$0xff]
    %v124 = vld [vmem:[#allocation5 + $0xd0] sm:$0xff]
    %v125 = vld [vmem:[#allocation5 + $0xd8] sm:$0xff]
    %v126 = vld [vmem:[#allocation5 + $0xe0] sm:$0xff]
    %v127 = vld [vmem:[#allocation5 + $0xe8] sm:$0xff]
    %v128 = vld [vmem:[#allocation5 + $0xf0] sm:$0xff]
    %v129 = vld [vmem:[#allocation5 + $0xf8] sm:$0xff]
    %v130 = vld [vmem:[#allocation5 + $0x100] sm:$0xff]
    %v131 = vld [vmem:[#allocation5 + $0x108] sm:$0xff]
    %v132 = vld [vmem:[#allocation5 + $0x110] sm:$0xff]
    %v133 = vld [vmem:[#allocation5 + $0x118] sm:$0xff]
    %v134 = vld [vmem:[#allocation5 + $0x120] sm:$0xff]
    %v135 = vld [vmem:[#allocation5 + $0x128] sm:$0xff]
    %v136 = vld [vmem:[#allocation5 + $0x130] sm:$0xff]
    %v137 = vld [vmem:[#allocation5 + $0x138] sm:$0xff]
    %v138 = vld [vmem:[#allocation5 + $0x140] sm:$0xff]
    %v139 = vld [vmem:[#allocation5 + $0x148] sm:$0xff]
    %v140 = vld [vmem:[#allocation5 + $0x150] sm:$0xff]
    %v141 = vld [vmem:[#allocation5 + $0x158] sm:$0xff]
    %v142 = vld [vmem:[#allocation5 + $0x160] sm:$0xff]
    %v143 = vld [vmem:[#allocation5 + $0x168] sm:$0xff]
    %v144 = vld [vmem:[#allocation5 + $0x170] sm:$0xff]
    %v145 = vld [vmem:[#allocation5 + $0x178] sm:$0xff]
    %v146 = vld [vmem:[#allocation5 + $0x180] sm:$0xff]
    %v147 = vld [vmem:[#allocation5 + $0x188] sm:$0xff]
    %v148 = vld [vmem:[#allocation5 + $0x190] sm:$0xff]
    %v149 = vld [vmem:[#allocation5 + $0x198] sm:$0xff]
    %v150 = vld [vmem:[#allocation5 + $0x1a0] sm:$0xff]
    %v151 = vld [vmem:[#allocation5 + $0x1a8] sm:$0xff]
    %v152 = vld [vmem:[#allocation5 + $0x1b0] sm:$0xff]
    %v153 = vld [vmem:[#allocation5 + $0x1b8] sm:$0xff]
    %v154 = vld [vmem:[#allocation5 + $0x1c0] sm:$0xff]
    %v155 = vld [vmem:[#allocation5 + $0x1c8] sm:$0xff]
    %v156 = vld [vmem:[#allocation5 + $0x1d0] sm:$0xff]
    %v157 = vld [vmem:[#allocation5 + $0x1d8] sm:$0xff]
    %v158 = vld [vmem:[#allocation5 + $0x1e0] sm:$0xff]
    %v159 = vld [vmem:[#allocation5 + $0x1e8] sm:$0xff]
    %v160 = vld [vmem:[#allocation5 + $0x1f0] sm:$0xff]
    %v161 = vld [vmem:[#allocation5 + $0x1f8] sm:$0xff]
    %v162 = vld [vmem:[#allocation2] sm:$0xff]
    %v163 = vld [vmem:[#allocation2 + $0x8] sm:$0xff]
    %v164 = vld [vmem:[#allocation2 + $0x10] sm:$0xff]
    %v165 = vld [vmem:[#allocation2 + $0x18] sm:$0xff]
    %v166 = vld [vmem:[#allocation2 + $0x20] sm:$0xff]
    %v167 = vld [vmem:[#allocation2 + $0x28] sm:$0xff]
    %v168 = vld [vmem:[#allocation2 + $0x30] sm:$0xff]
    %v169 = vld [vmem:[#allocation2 + $0x38] sm:$0xff]
    %v170 = vld [vmem:[#allocation2 + $0x40] sm:$0xff]
    %v171 = vld [vmem:[#allocation2 + $0x48] sm:$0xff]
    %v172 = vld [vmem:[#allocation2 + $0x50] sm:$0xff]
    %v173 = vld [vmem:[#allocation2 + $0x58] sm:$0xff]
    %v174 = vld [vmem:[#allocation2 + $0x60] sm:$0xff]
    %v175 = vld [vmem:[#allocation2 + $0x68] sm:$0xff]
    %v176 = vld [vmem:[#allocation2 + $0x70] sm:$0xff]
    %v177 = vld [vmem:[#allocation2 + $0x78] sm:$0xff]
    %v178 = vld [vmem:[#allocation2 + $0x80] sm:$0xff]
    %v179 = vld [vmem:[#allocation2 + $0x88] sm:$0xff]
    %v180 = vld [vmem:[#allocation2 + $0x90] sm:$0xff]
    %v181 = vld [vmem:[#allocation2 + $0x98] sm:$0xff]
    %v182 = vld [vmem:[#allocation2 + $0xa0] sm:$0xff]
    %v183 = vld [vmem:[#allocation2 + $0xa8] sm:$0xff]
    %v184 = vld [vmem:[#allocation2 + $0xb0] sm:$0xff]
    %v185 = vld [vmem:[#allocation2 + $0xb8] sm:$0xff]
    %v186 = vld [vmem:[#allocation2 + $0xc0] sm:$0xff]
    %v187 = vld [vmem:[#allocation2 + $0xc8] sm:$0xff]
    %v188 = vld [vmem:[#allocation2 + $0xd0] sm:$0xff]
    %v189 = vld [vmem:[#allocation2 + $0xd8] sm:$0xff]
    %v190 = vld [vmem:[#allocation2 + $0xe0] sm:$0xff]
    %v191 = vld [vmem:[#allocation2 + $0xe8] sm:$0xff]
    %v192 = vld [vmem:[#allocation2 + $0xf0] sm:$0xff]
    %v193 = vld [vmem:[#allocation2 + $0xf8] sm:$0xff]
    %v194 = vld [vmem:[#allocation7] sm:$0xff]
    %v195 = vld [vmem:[#allocation7 + $0x8] sm:$0xff]
    %v196 = vld [vmem:[#allocation7 + $0x10] sm:$0xff]
    %v197 = vld [vmem:[#allocation7 + $0x18] sm:$0xff]
    %v198 = vld [vmem:[#allocation7 + $0x20] sm:$0xff]
    %v199 = vld [vmem:[#allocation7 + $0x28] sm:$0xff]
    %v200 = vld [vmem:[#allocation7 + $0x30] sm:$0xff]
    %v201 = vld [vmem:[#allocation7 + $0x38] sm:$0xff]
    %v202 = vld [vmem:[#allocation7 + $0x40] sm:$0xff]
    %v203 = vld [vmem:[#allocation7 + $0x48] sm:$0xff]
    %v204 = vld [vmem:[#allocation7 + $0x50] sm:$0xff]
    %v205 = vld [vmem:[#allocation7 + $0x58] sm:$0xff]
    %v206 = vld [vmem:[#allocation7 + $0x60] sm:$0xff]
    %v207 = vld [vmem:[#allocation7 + $0x68] sm:$0xff]
    %v208 = vld [vmem:[#allocation7 + $0x70] sm:$0xff]
    %v209 = vld [vmem:[#allocation7 + $0x78] sm:$0xff]
    %v210 = vld [vmem:[#allocation7 + $0x80] sm:$0xff]
    %v211 = vld [vmem:[#allocation7 + $0x88] sm:$0xff]
    %v212 = vld [vmem:[#allocation7 + $0x90] sm:$0xff]
    %v213 = vld [vmem:[#allocation7 + $0x98] sm:$0xff]
    %v214 = vld [vmem:[#allocation7 + $0xa0] sm:$0xff]
    %v215 = vld [vmem:[#allocation7 + $0xa8] sm:$0xff]
    %v216 = vld [vmem:[#allocation7 + $0xb0] sm:$0xff]
    %v217 = vld [vmem:[#allocation7 + $0xb8] sm:$0xff]
    %v218 = vld [vmem:[#allocation7 + $0xc0] sm:$0xff]
    %v219 = vld [vmem:[#allocation7 + $0xc8] sm:$0xff]
    %v220 = vld [vmem:[#allocation7 + $0xd0] sm:$0xff]
    %v221 = vld [vmem:[#allocation7 + $0xd8] sm:$0xff]
    %v222 = vld [vmem:[#allocation7 + $0xe0] sm:$0xff]
    %v223 = vld [vmem:[#allocation7 + $0xe8] sm:$0xff]
    %v224 = vld [vmem:[#allocation7 + $0xf0] sm:$0xff]
    %v225 = vld [vmem:[#allocation7 + $0xf8] sm:$0xff]
    %226 = vmatprep.subr.mxu0 %v195
    %227 = vmatpush1.msra.mxu0 %v194
    %228 = vmatprep.subr.mxu0 %v197
    %229 = vmatpush1.msra.mxu0 %v196
    %230 = vmatprep.subr.mxu0 %v199
    %231 = vmatpush1.msra.mxu0 %v198
    %232 = vmatprep.subr.mxu0 %v201
    %233 = vmatpush1.msra.mxu0 %v200
    %234 = vmatprep.subr.mxu0 %v203
    %235 = vmatpush1.msra.mxu0 %v202
    %236 = vmatprep.subr.mxu0 %v205
    %237 = vmatpush1.msra.mxu0 %v204
    %238 = vmatprep.subr.mxu0 %v207
    %239 = vmatpush1.msra.mxu0 %v206
    %240 = vmatprep.subr.mxu0 %v209
    %241 = vmatpush1.msra.mxu0 %v208
    %242 = vmatprep.subr.mxu0 %v211
    %243 = vmatpush1.msra.mxu0 %v210
    %244 = vmatprep.subr.mxu0 %v213
    %245 = vmatpush1.msra.mxu0 %v212
    %246 = vmatprep.subr.mxu0 %v215
    %247 = vmatpush1.msra.mxu0 %v214
    %248 = vmatprep.subr.mxu0 %v217
    %249 = vmatpush1.msra.mxu0 %v216
    %250 = vmatprep.subr.mxu0 %v219
    %251 = vmatpush1.msra.mxu0 %v218
    %252 = vmatprep.subr.mxu0 %v221
    %253 = vmatpush1.msra.mxu0 %v220
    %254 = vmatprep.subr.mxu0 %v223
    %255 = vmatpush1.msra.mxu0 %v222
    %256 = vmatprep.subr.mxu0 %v225
    %257 = vmatpush1.msra.mxu0 %v224
    %258 = vmatprep.subr.mxu0 0.0
    %259 = vmatpush1.msra.mxu0 0.0
    %260 = vmatprep.subr.mxu0 0.0
    %261 = vmatpush1.msra.mxu0 0.0
    %262 = vmatprep.subr.mxu0 0.0
    %263 = vmatpush1.msra.mxu0 0.0
    %264 = vmatprep.subr.mxu0 0.0
    %265 = vmatpush1.msra.mxu0 0.0
    %266 = vmatprep.subr.mxu0 0.0
    %267 = vmatpush1.msra.mxu0 0.0
    %268 = vmatprep.subr.mxu0 0.0
    %269 = vmatpush1.msra.mxu0 0.0
    %270 = vmatprep.subr.mxu0 0.0
    %271 = vmatpush1.msra.mxu0 0.0
    %272 = vmatprep.subr.mxu0 0.0
    %273 = vmatpush1.msra.mxu0 0.0
    %274 = vmatprep.subr.mxu0 0.0
    %275 = vmatpush1.msra.mxu0 0.0
    %276 = vmatprep.subr.mxu0 0.0
    %277 = vmatpush1.msra.mxu0 0.0
    %278 = vmatprep.subr.mxu0 0.0
    %279 = vmatpush1.msra.mxu0 0.0
    %280 = vmatprep.subr.mxu0 0.0
    %281 = vmatpush1.msra.mxu0 0.0
    %282 = vmatprep.subr.mxu0 0.0
    %283 = vmatpush1.msra.mxu0 0.0
    %284 = vmatprep.subr.mxu0 0.0
    %285 = vmatpush1.msra.mxu0 0.0
    %286 = vmatprep.subr.mxu0 0.0
    %287 = vmatpush1.msra.mxu0 0.0
    %288 = vmatprep.subr.mxu0 0.0
    %289 = vmatpush1.msra.mxu0 0.0
    %290 = vmatprep.mubr.f32.mxu0 0.0
    %291 = vmatmul.mubr.f32.gmra.mrb[0].mxu0 %v162
    %v292 = vpop.f32.mrb[0].mxu0
    %v293 = vadd.f32 0.0, %v292
    %v294 = vpop.f32.mrb[0].mxu0
    %v295 = vadd.f32 0.0, %v294
    %296 = vmatprep.mubr.f32.mxu0 0.0
    %297 = vmatmul.mubr.f32.gmra.mrb[0].mxu0 %v163
    %v298 = vpop.f32.mrb[0].mxu0
    %v299 = vadd.f32 0.0, %v298
    %v300 = vpop.f32.mrb[0].mxu0
    %v301 = vadd.f32 0.0, %v300
    %302 = vmatprep.mubr.f32.mxu0 0.0
    %303 = vmatmul.mubr.f32.gmra.mrb[0].mxu0 %v164
    %v304 = vpop.f32.mrb[0].mxu0
    %v305 = vadd.f32 0.0, %v304
    %v306 = vpop.f32.mrb[0].mxu0
    %v307 = vadd.f32 0.0, %v306
    %308 = vmatprep.mubr.f32.mxu0 0.0
    %309 = vmatmul.mubr.f32.gmra.mrb[0].mxu0 %v165
    %v310 = vpop.f32.mrb[0].mxu0
    %v311 = vadd.f32 0.0, %v310
    %v312 = vpop.f32.mrb[0].mxu0
    %v313 = vadd.f32 0.0, %v312
    %314 = vmatprep.mubr.f32.mxu0 0.0
    %315 = vmatmul.mubr.f32.gmra.mrb[0].mxu0 %v166
    %v316 = vpop.f32.mrb[0].mxu0
    %v317 = vadd.f32 0.0, %v316
    %v318 = vpop.f32.mrb[0].mxu0
    %v319 = vadd.f32 0.0, %v318
    %320 = vmatprep.mubr.f32.mxu0 0.0
    %321 = vmatmul.mubr.f32.gmra.mrb[0].mxu0 %v167
    %v322 = vpop.f32.mrb[0].mxu0
    %v323 = vadd.f32 0.0, %v322
    %v324 = vpop.f32.mrb[0].mxu0
    %v325 = vadd.f32 0.0, %v324
    %326 = vmatprep.mubr.f32.mxu0 0.0
    %327 = vmatmul.mubr.f32.gmra.mrb[0].mxu0 %v168
    %v328 = vpop.f32.mrb[0].mxu0
    %v329 = vadd.f32 0.0, %v328
    %v330 = vpop.f32.mrb[0].mxu0
    %v331 = vadd.f32 0.0, %v330
    %332 = vmatprep.mubr.f32.mxu0 0.0
    %333 = vmatmul.mubr.f32.gmra.mrb[0].mxu0 %v169
    %v334 = vpop.f32.mrb[0].mxu0
    %v335 = vadd.f32 0.0, %v334
    %v336 = vpop.f32.mrb[0].mxu0
    %v337 = vadd.f32 0.0, %v336
    %338 = vmatprep.mubr.f32.mxu0 0.0
    %339 = vmatmul.mubr.f32.gmra.mrb[0].mxu0 %v170
    %v340 = vpop.f32.mrb[0].mxu0
    %v341 = vadd.f32 0.0, %v340
    %v342 = vpop.f32.mrb[0].mxu0
    %v343 = vadd.f32 0.0, %v342
    %344 = vmatprep.mubr.f32.mxu0 0.0
    %345 = vmatmul.mubr.f32.gmra.mrb[0].mxu0 %v171
    %v346 = vpop.f32.mrb[0].mxu0
    %v347 = vadd.f32 0.0, %v346
    %v348 = vpop.f32.mrb[0].mxu0
    %v349 = vadd.f32 0.0, %v348
    %350 = vmatprep.mubr.f32.mxu0 0.0
    %351 = vmatmul.mubr.f32.gmra.mrb[0].mxu0 %v172
    %v352 = vpop.f32.mrb[0].mxu0
    %v353 = vadd.f32 0.0, %v352
    %v354 = vpop.f32.mrb[0].mxu0
    %v355 = vadd.f32 0.0, %v354
    %356 = vmatprep.mubr.f32.mxu0 0.0
    %357 = vmatmul.mubr.f32.gmra.mrb[0].mxu0 %v173
    %v358 = vpop.f32.mrb[0].mxu0
    %v359 = vadd.f32 0.0, %v358
    %v360 = vpop.f32.mrb[0].mxu0
    %v361 = vadd.f32 0.0, %v360
    %362 = vmatprep.mubr.f32.mxu0 0.0
    %363 = vmatmul.mubr.f32.gmra.mrb[0].mxu0 %v174
    %v364 = vpop.f32.mrb[0].mxu0
    %v365 = vadd.f32 0.0, %v364
    %v366 = vpop.f32.mrb[0].mxu0
    %v367 = vadd.f32 0.0, %v366
    %368 = vmatprep.mubr.f32.mxu0 0.0
    %369 = vmatmul.mubr.f32.gmra.mrb[0].mxu0 %v175
    %v370 = vpop.f32.mrb[0].mxu0
    %v371 = vadd.f32 0.0, %v370
    %v372 = vpop.f32.mrb[0].mxu0
    %v373 = vadd.f32 0.0, %v372
    %374 = vmatprep.mubr.f32.mxu0 0.0
    %375 = vmatmul.mubr.f32.gmra.mrb[0].mxu0 %v176
    %v376 = vpop.f32.mrb[0].mxu0
    %v377 = vadd.f32 0.0, %v376
    %v378 = vpop.f32.mrb[0].mxu0
    %v379 = vadd.f32 0.0, %v378
    %380 = vmatprep.mubr.f32.mxu0 0.0
    %381 = vmatmul.mubr.f32.gmra.mrb[0].mxu0 %v177
    %v382 = vpop.f32.mrb[0].mxu0
    %v383 = vadd.f32 0.0, %v382
    %v384 = vpop.f32.mrb[0].mxu0
    %v385 = vadd.f32 0.0, %v384
    %386 = vmatprep.mubr.f32.mxu0 0.0
    %387 = vmatmul.mubr.f32.gmra.mrb[0].mxu0 %v178
    %v388 = vpop.f32.mrb[0].mxu0
    %v389 = vadd.f32 0.0, %v388
    %v390 = vpop.f32.mrb[0].mxu0
    %v391 = vadd.f32 0.0, %v390
    %392 = vmatprep.mubr.f32.mxu0 0.0
    %393 = vmatmul.mubr.f32.gmra.mrb[0].mxu0 %v179
    %v394 = vpop.f32.mrb[0].mxu0
    %v395 = vadd.f32 0.0, %v394
    %v396 = vpop.f32.mrb[0].mxu0
    %v397 = vadd.f32 0.0, %v396
    %398 = vmatprep.mubr.f32.mxu0 0.0
    %399 = vmatmul.mubr.f32.gmra.mrb[0].mxu0 %v180
    %v400 = vpop.f32.mrb[0].mxu0
    %v401 = vadd.f32 0.0, %v400
    %v402 = vpop.f32.mrb[0].mxu0
    %v403 = vadd.f32 0.0, %v402
    %404 = vmatprep.mubr.f32.mxu0 0.0
    %405 = vmatmul.mubr.f32.gmra.mrb[0].mxu0 %v181
    %v406 = vpop.f32.mrb[0].mxu0
    %v407 = vadd.f32 0.0, %v406
    %v408 = vpop.f32.mrb[0].mxu0
    %v409 = vadd.f32 0.0, %v408
    %410 = vmatprep.mubr.f32.mxu0 0.0
    %411 = vmatmul.mubr.f32.gmra.mrb[0].mxu0 %v182
    %v412 = vpop.f32.mrb[0].mxu0
    %v413 = vadd.f32 0.0, %v412
    %v414 = vpop.f32.mrb[0].mxu0
    %v415 = vadd.f32 0.0, %v414
    %416 = vmatprep.mubr.f32.mxu0 0.0
    %417 = vmatmul.mubr.f32.gmra.mrb[0].mxu0 %v183
    %v418 = vpop.f32.mrb[0].mxu0
    %v419 = vadd.f32 0.0, %v418
    %v420 = vpop.f32.mrb[0].mxu0
    %v421 = vadd.f32 0.0, %v420
    %422 = vmatprep.mubr.f32.mxu0 0.0
    %423 = vmatmul.mubr.f32.gmra.mrb[0].mxu0 %v184
    %v424 = vpop.f32.mrb[0].mxu0
    %v425 = vadd.f32 0.0, %v424
    %v426 = vpop.f32.mrb[0].mxu0
    %v427 = vadd.f32 0.0, %v426
    %428 = vmatprep.mubr.f32.mxu0 0.0
    %429 = vmatmul.mubr.f32.gmra.mrb[0].mxu0 %v185
    %v430 = vpop.f32.mrb[0].mxu0
    %v431 = vadd.f32 0.0, %v430
    %v432 = vpop.f32.mrb[0].mxu0
    %v433 = vadd.f32 0.0, %v432
    %434 = vmatprep.mubr.f32.mxu0 0.0
    %435 = vmatmul.mubr.f32.gmra.mrb[0].mxu0 %v186
    %v436 = vpop.f32.mrb[0].mxu0
    %v437 = vadd.f32 0.0, %v436
    %v438 = vpop.f32.mrb[0].mxu0
    %v439 = vadd.f32 0.0, %v438
    %440 = vmatprep.mubr.f32.mxu0 0.0
    %441 = vmatmul.mubr.f32.gmra.mrb[0].mxu0 %v187
    %v442 = vpop.f32.mrb[0].mxu0
    %v443 = vadd.f32 0.0, %v442
    %v444 = vpop.f32.mrb[0].mxu0
    %v445 = vadd.f32 0.0, %v444
    %446 = vmatprep.mubr.f32.mxu0 0.0
    %447 = vmatmul.mubr.f32.gmra.mrb[0].mxu0 %v188
    %v448 = vpop.f32.mrb[0].mxu0
    %v449 = vadd.f32 0.0, %v448
    %v450 = vpop.f32.mrb[0].mxu0
    %v451 = vadd.f32 0.0, %v450
    %452 = vmatprep.mubr.f32.mxu0 0.0
    %453 = vmatmul.mubr.f32.gmra.mrb[0].mxu0 %v189
    %v454 = vpop.f32.mrb[0].mxu0
    %v455 = vadd.f32 0.0, %v454
    %v456 = vpop.f32.mrb[0].mxu0
    %v457 = vadd.f32 0.0, %v456
    %458 = vmatprep.mubr.f32.mxu0 0.0
    %459 = vmatmul.mubr.f32.gmra.mrb[0].mxu0 %v190
    %v460 = vpop.f32.mrb[0].mxu0
    %v461 = vadd.f32 0.0, %v460
    %v462 = vpop.f32.mrb[0].mxu0
    %v463 = vadd.f32 0.0, %v462
    %464 = vmatprep.mubr.f32.mxu0 0.0
    %465 = vmatmul.mubr.f32.gmra.mrb[0].mxu0 %v191
    %v466 = vpop.f32.mrb[0].mxu0
    %v467 = vadd.f32 0.0, %v466
    %v468 = vpop.f32.mrb[0].mxu0
    %v469 = vadd.f32 0.0, %v468
    %470 = vmatprep.mubr.f32.mxu0 0.0
    %471 = vmatmul.mubr.f32.gmra.mrb[0].mxu0 %v192
    %v472 = vpop.f32.mrb[0].mxu0
    %v473 = vadd.f32 0.0, %v472
    %v474 = vpop.f32.mrb[0].mxu0
    %v475 = vadd.f32 0.0, %v474
    %476 = vmatprep.mubr.f32.mxu0 0.0
    %477 = vmatmul.mubr.f32.gmra.mrb[0].mxu0 %v193
    %v478 = vpop.f32.mrb[0].mxu0
    %v479 = vadd.f32 0.0, %v478
    %v480 = vpop.f32.mrb[0].mxu0
    %v481 = vadd.f32 0.0, %v480
    %482 = vdwg.mxu0
    %v483 = vld [vmem:[%s3] sm:$0x3]
    %v485 = vlaneseq
    %v486 = vshrl.u32 %v485, 7
    %v487 = vsub.s32 0, %v486
    %v488 = vrot.slane %v483, %v487
    %v489 = vlaneseq
    %v490 = vshrl.u32 %v489, 7
    %v491 = vsub.s32 1, %v490
    %v492 = vrot.slane %v483, %v491
    %495 = vmatprep.subr.mxu0 %v295
    %496 = vmatpush1.msra.mxu0 %v293
    %497 = vmatprep.subr.mxu0 %v301
    %498 = vmatpush1.msra.mxu0 %v299
    %499 = vmatprep.subr.mxu0 %v307
    %500 = vmatpush1.msra.mxu0 %v305
    %501 = vmatprep.subr.mxu0 %v313
    %502 = vmatpush1.msra.mxu0 %v311
    %503 = vmatprep.subr.mxu0 %v319
    %504 = vmatpush1.msra.mxu0 %v317
    %505 = vmatprep.subr.mxu0 %v325
    %506 = vmatpush1.msra.mxu0 %v323
    %507 = vmatprep.subr.mxu0 %v331
    %508 = vmatpush1.msra.mxu0 %v329
    %509 = vmatprep.subr.mxu0 %v337
    %510 = vmatpush1.msra.mxu0 %v335
    %511 = vmatprep.subr.mxu0 %v343
    %512 = vmatpush1.msra.mxu0 %v341
    %513 = vmatprep.subr.mxu0 %v349
    %514 = vmatpush1.msra.mxu0 %v347
    %515 = vmatprep.subr.mxu0 %v355
    %516 = vmatpush1.msra.mxu0 %v353
    %517 = vmatprep.subr.mxu0 %v361
    %518 = vmatpush1.msra.mxu0 %v359
    %519 = vmatprep.subr.mxu0 %v367
    %520 = vmatpush1.msra.mxu0 %v365
    %521 = vmatprep.subr.mxu0 %v373
    %522 = vmatpush1.msra.mxu0 %v371
    %523 = vmatprep.subr.mxu0 %v379
    %524 = vmatpush1.msra.mxu0 %v377
    %525 = vmatprep.subr.mxu0 %v385
    %526 = vmatpush1.msra.mxu0 %v383
    %527 = vmatprep.subr.mxu0 %v391
    %528 = vmatpush1.msra.mxu0 %v389
    %529 = vmatprep.subr.mxu0 %v397
    %530 = vmatpush1.msra.mxu0 %v395
    %531 = vmatprep.subr.mxu0 %v403
    %532 = vmatpush1.msra.mxu0 %v401
    %533 = vmatprep.subr.mxu0 %v409
    %534 = vmatpush1.msra.mxu0 %v407
    %535 = vmatprep.subr.mxu0 %v415
    %536 = vmatpush1.msra.mxu0 %v413
    %537 = vmatprep.subr.mxu0 %v421
    %538 = vmatpush1.msra.mxu0 %v419
    %539 = vmatprep.subr.mxu0 %v427
    %540 = vmatpush1.msra.mxu0 %v425
    %541 = vmatprep.subr.mxu0 %v433
    %542 = vmatpush1.msra.mxu0 %v431
    %543 = vmatprep.subr.mxu0 %v439
    %544 = vmatpush1.msra.mxu0 %v437
    %545 = vmatprep.subr.mxu0 %v445
    %546 = vmatpush1.msra.mxu0 %v443
    %547 = vmatprep.subr.mxu0 %v451
    %548 = vmatpush1.msra.mxu0 %v449
    %549 = vmatprep.subr.mxu0 %v457
    %550 = vmatpush1.msra.mxu0 %v455
    %551 = vmatprep.subr.mxu0 %v463
    %552 = vmatpush1.msra.mxu0 %v461
    %553 = vmatprep.subr.mxu0 %v469
    %554 = vmatpush1.msra.mxu0 %v467
    %555 = vmatprep.subr.mxu0 %v475
    %556 = vmatpush1.msra.mxu0 %v473
    %557 = vmatprep.subr.mxu0 %v481
    %558 = vmatpush1.msra.mxu0 %v479
    %559 = vmatprep.mubr.f32.mxu0 %v99
    %560 = vmatmul.mubr.f32.gmra.mrb[0].mxu0 %v98
    %v561 = vpop.f32.mrb[0].mxu0
    %v562 = vadd.f32 %v488, %v561
    %v563 = vpop.f32.mrb[0].mxu0
    %v564 = vadd.f32 %v492, %v563
    %565 = vmatprep.mubr.f32.mxu0 %v101
    %566 = vmatmul.mubr.f32.gmra.mrb[0].mxu0 %v100
    %v567 = vpop.f32.mrb[0].mxu0
    %v568 = vadd.f32 %v488, %v567
    %v569 = vpop.f32.mrb[0].mxu0
    %v570 = vadd.f32 %v492, %v569
    %571 = vmatprep.mubr.f32.mxu0 %v103
    %572 = vmatmul.mubr.f32.gmra.mrb[0].mxu0 %v102
    %v573 = vpop.f32.mrb[0].mxu0
    %v574 = vadd.f32 %v488, %v573
    %v575 = vpop.f32.mrb[0].mxu0
    %v576 = vadd.f32 %v492, %v575
    %577 = vmatprep.mubr.f32.mxu0 %v105
    %578 = vmatmul.mubr.f32.gmra.mrb[0].mxu0 %v104
    %v579 = vpop.f32.mrb[0].mxu0
    %v580 = vadd.f32 %v488, %v579
    %v581 = vpop.f32.mrb[0].mxu0
    %v582 = vadd.f32 %v492, %v581
    %583 = vmatprep.mubr.f32.mxu0 %v107
    %584 = vmatmul.mubr.f32.gmra.mrb[0].mxu0 %v106
    %v585 = vpop.f32.mrb[0].mxu0
    %v586 = vadd.f32 %v488, %v585
    %v587 = vpop.f32.mrb[0].mxu0
    %v588 = vadd.f32 %v492, %v587
    %589 = vmatprep.mubr.f32.mxu0 %v109
    %590 = vmatmul.mubr.f32.gmra.mrb[0].mxu0 %v108
    %v591 = vpop.f32.mrb[0].mxu0
    %v592 = vadd.f32 %v488, %v591
    %v593 = vpop.f32.mrb[0].mxu0
    %v594 = vadd.f32 %v492, %v593
    %595 = vmatprep.mubr.f32.mxu0 %v111
    %596 = vmatmul.mubr.f32.gmra.mrb[0].mxu0 %v110
    %v597 = vpop.f32.mrb[0].mxu0
    %v598 = vadd.f32 %v488, %v597
    %v599 = vpop.f32.mrb[0].mxu0
    %v600 = vadd.f32 %v492, %v599
    %601 = vmatprep.mubr.f32.mxu0 %v113
    %602 = vmatmul.mubr.f32.gmra.mrb[0].mxu0 %v112
    %v603 = vpop.f32.mrb[0].mxu0
    %v604 = vadd.f32 %v488, %v603
    %v605 = vpop.f32.mrb[0].mxu0
    %v606 = vadd.f32 %v492, %v605
    %607 = vmatprep.mubr.f32.mxu0 %v115
    %608 = vmatmul.mubr.f32.gmra.mrb[0].mxu0 %v114
    %v609 = vpop.f32.mrb[0].mxu0
    %v610 = vadd.f32 %v488, %v609
    %v611 = vpop.f32.mrb[0].mxu0
    %v612 = vadd.f32 %v492, %v611
    %613 = vmatprep.mubr.f32.mxu0 %v117
    %614 = vmatmul.mubr.f32.gmra.mrb[0].mxu0 %v116
    %v615 = vpop.f32.mrb[0].mxu0
    %v616 = vadd.f32 %v488, %v615
    %v617 = vpop.f32.mrb[0].mxu0
    %v618 = vadd.f32 %v492, %v617
    %619 = vmatprep.mubr.f32.mxu0 %v119
    %620 = vmatmul.mubr.f32.gmra.mrb[0].mxu0 %v118
    %v621 = vpop.f32.mrb[0].mxu0
    %v622 = vadd.f32 %v488, %v621
    %v623 = vpop.f32.mrb[0].mxu0
    %v624 = vadd.f32 %v492, %v623
    %625 = vmatprep.mubr.f32.mxu0 %v121
    %626 = vmatmul.mubr.f32.gmra.mrb[0].mxu0 %v120
    %v627 = vpop.f32.mrb[0].mxu0
    %v628 = vadd.f32 %v488, %v627
    %v629 = vpop.f32.mrb[0].mxu0
    %v630 = vadd.f32 %v492, %v629
    %631 = vmatprep.mubr.f32.mxu0 %v123
    %632 = vmatmul.mubr.f32.gmra.mrb[0].mxu0 %v122
    %v633 = vpop.f32.mrb[0].mxu0
    %v634 = vadd.f32 %v488, %v633
    %v635 = vpop.f32.mrb[0].mxu0
    %v636 = vadd.f32 %v492, %v635
    %637 = vmatprep.mubr.f32.mxu0 %v125
    %638 = vmatmul.mubr.f32.gmra.mrb[0].mxu0 %v124
    %v639 = vpop.f32.mrb[0].mxu0
    %v640 = vadd.f32 %v488, %v639
    %v641 = vpop.f32.mrb[0].mxu0
    %v642 = vadd.f32 %v492, %v641
    %643 = vmatprep.mubr.f32.mxu0 %v127
    %644 = vmatmul.mubr.f32.gmra.mrb[0].mxu0 %v126
    %v645 = vpop.f32.mrb[0].mxu0
    %v646 = vadd.f32 %v488, %v645
    %v647 = vpop.f32.mrb[0].mxu0
    %v648 = vadd.f32 %v492, %v647
    %649 = vmatprep.mubr.f32.mxu0 %v129
    %650 = vmatmul.mubr.f32.gmra.mrb[0].mxu0 %v128
    %v651 = vpop.f32.mrb[0].mxu0
    %v652 = vadd.f32 %v488, %v651
    %v653 = vpop.f32.mrb[0].mxu0
    %v654 = vadd.f32 %v492, %v653
    %655 = vmatprep.mubr.f32.mxu0 %v131
    %656 = vmatmul.mubr.f32.gmra.mrb[0].mxu0 %v130
    %v657 = vpop.f32.mrb[0].mxu0
    %v658 = vadd.f32 %v488, %v657
    %v659 = vpop.f32.mrb[0].mxu0
    %v660 = vadd.f32 %v492, %v659
    %661 = vmatprep.mubr.f32.mxu0 %v133
    %662 = vmatmul.mubr.f32.gmra.mrb[0].mxu0 %v132
    %v663 = vpop.f32.mrb[0].mxu0
    %v664 = vadd.f32 %v488, %v663
    %v665 = vpop.f32.mrb[0].mxu0
    %v666 = vadd.f32 %v492, %v665
    %667 = vmatprep.mubr.f32.mxu0 %v135
    %668 = vmatmul.mubr.f32.gmra.mrb[0].mxu0 %v134
    %v669 = vpop.f32.mrb[0].mxu0
    %v670 = vadd.f32 %v488, %v669
    %v671 = vpop.f32.mrb[0].mxu0
    %v672 = vadd.f32 %v492, %v671
    %673 = vmatprep.mubr.f32.mxu0 %v137
    %674 = vmatmul.mubr.f32.gmra.mrb[0].mxu0 %v136
    %v675 = vpop.f32.mrb[0].mxu0
    %v676 = vadd.f32 %v488, %v675
    %v677 = vpop.f32.mrb[0].mxu0
    %v678 = vadd.f32 %v492, %v677
    %679 = vmatprep.mubr.f32.mxu0 %v139
    %680 = vmatmul.mubr.f32.gmra.mrb[0].mxu0 %v138
    %v681 = vpop.f32.mrb[0].mxu0
    %v682 = vadd.f32 %v488, %v681
    %v683 = vpop.f32.mrb[0].mxu0
    %v684 = vadd.f32 %v492, %v683
    %685 = vmatprep.mubr.f32.mxu0 %v141
    %686 = vmatmul.mubr.f32.gmra.mrb[0].mxu0 %v140
    %v687 = vpop.f32.mrb[0].mxu0
    %v688 = vadd.f32 %v488, %v687
    %v689 = vpop.f32.mrb[0].mxu0
    %v690 = vadd.f32 %v492, %v689
    %691 = vmatprep.mubr.f32.mxu0 %v143
    %692 = vmatmul.mubr.f32.gmra.mrb[0].mxu0 %v142
    %v693 = vpop.f32.mrb[0].mxu0
    %v694 = vadd.f32 %v488, %v693
    %v695 = vpop.f32.mrb[0].mxu0
    %v696 = vadd.f32 %v492, %v695
    %697 = vmatprep.mubr.f32.mxu0 %v145
    %698 = vmatmul.mubr.f32.gmra.mrb[0].mxu0 %v144
    %v699 = vpop.f32.mrb[0].mxu0
    %v700 = vadd.f32 %v488, %v699
    %v701 = vpop.f32.mrb[0].mxu0
    %v702 = vadd.f32 %v492, %v701
    %703 = vmatprep.mubr.f32.mxu0 %v147
    %704 = vmatmul.mubr.f32.gmra.mrb[0].mxu0 %v146
    %v705 = vpop.f32.mrb[0].mxu0
    %v706 = vadd.f32 %v488, %v705
    %v707 = vpop.f32.mrb[0].mxu0
    %v708 = vadd.f32 %v492, %v707
    %709 = vmatprep.mubr.f32.mxu0 %v149
    %710 = vmatmul.mubr.f32.gmra.mrb[0].mxu0 %v148
    %v711 = vpop.f32.mrb[0].mxu0
    %v712 = vadd.f32 %v488, %v711
    %v713 = vpop.f32.mrb[0].mxu0
    %v714 = vadd.f32 %v492, %v713
    %715 = vmatprep.mubr.f32.mxu0 %v151
    %716 = vmatmul.mubr.f32.gmra.mrb[0].mxu0 %v150
    %v717 = vpop.f32.mrb[0].mxu0
    %v718 = vadd.f32 %v488, %v717
    %v719 = vpop.f32.mrb[0].mxu0
    %v720 = vadd.f32 %v492, %v719
    %721 = vmatprep.mubr.f32.mxu0 %v153
    %722 = vmatmul.mubr.f32.gmra.mrb[0].mxu0 %v152
    %v723 = vpop.f32.mrb[0].mxu0
    %v724 = vadd.f32 %v488, %v723
    %v725 = vpop.f32.mrb[0].mxu0
    %v726 = vadd.f32 %v492, %v725
    %727 = vmatprep.mubr.f32.mxu0 %v155
    %728 = vmatmul.mubr.f32.gmra.mrb[0].mxu0 %v154
    %v729 = vpop.f32.mrb[0].mxu0
    %v730 = vadd.f32 %v488, %v729
    %v731 = vpop.f32.mrb[0].mxu0
    %v732 = vadd.f32 %v492, %v731
    %733 = vmatprep.mubr.f32.mxu0 %v157
    %734 = vmatmul.mubr.f32.gmra.mrb[0].mxu0 %v156
    %v735 = vpop.f32.mrb[0].mxu0
    %v736 = vadd.f32 %v488, %v735
    %v737 = vpop.f32.mrb[0].mxu0
    %v738 = vadd.f32 %v492, %v737
    %739 = vmatprep.mubr.f32.mxu0 %v159
    %740 = vmatmul.mubr.f32.gmra.mrb[0].mxu0 %v158
    %v741 = vpop.f32.mrb[0].mxu0
    %v742 = vadd.f32 %v488, %v741
    %v743 = vpop.f32.mrb[0].mxu0
    %v744 = vadd.f32 %v492, %v743
    %745 = vmatprep.mubr.f32.mxu0 %v161
    %746 = vmatmul.mubr.f32.gmra.mrb[0].mxu0 %v160
    %v747 = vpop.f32.mrb[0].mxu0
    %v748 = vadd.f32 %v488, %v747
    %v749 = vpop.f32.mrb[0].mxu0
    %v750 = vadd.f32 %v492, %v749
    %751 = vdwg.mxu0
    %v752 = vmax.f32 %v562, 0.0
    %v753 = vmax.f32 %v564, 0.0
    %v754 = vmax.f32 %v568, 0.0
    %v755 = vmax.f32 %v570, 0.0
    %v756 = vmax.f32 %v574, 0.0
    %v757 = vmax.f32 %v576, 0.0
    %v758 = vmax.f32 %v580, 0.0
    %v759 = vmax.f32 %v582, 0.0
    %v760 = vmax.f32 %v586, 0.0
    %v761 = vmax.f32 %v588, 0.0
    %v762 = vmax.f32 %v592, 0.0
    %v763 = vmax.f32 %v594, 0.0
    %v764 = vmax.f32 %v598, 0.0
    %v765 = vmax.f32 %v600, 0.0
    %v766 = vmax.f32 %v604, 0.0
    %v767 = vmax.f32 %v606, 0.0
    %v768 = vmax.f32 %v610, 0.0
    %v769 = vmax.f32 %v612, 0.0
    %v770 = vmax.f32 %v616, 0.0
    %v771 = vmax.f32 %v618, 0.0
    %v772 = vmax.f32 %v622, 0.0
    %v773 = vmax.f32 %v624, 0.0
    %v774 = vmax.f32 %v628, 0.0
    %v775 = vmax.f32 %v630, 0.0
    %v776 = vmax.f32 %v634, 0.0
    %v777 = vmax.f32 %v636, 0.0
    %v778 = vmax.f32 %v640, 0.0
    %v779 = vmax.f32 %v642, 0.0
    %v780 = vmax.f32 %v646, 0.0
    %v781 = vmax.f32 %v648, 0.0
    %v782 = vmax.f32 %v652, 0.0
    %v783 = vmax.f32 %v654, 0.0
    %v784 = vmax.f32 %v658, 0.0
    %v785 = vmax.f32 %v660, 0.0
    %v786 = vmax.f32 %v664, 0.0
    %v787 = vmax.f32 %v666, 0.0
    %v788 = vmax.f32 %v670, 0.0
    %v789 = vmax.f32 %v672, 0.0
    %v790 = vmax.f32 %v676, 0.0
    %v791 = vmax.f32 %v678, 0.0
    %v792 = vmax.f32 %v682, 0.0
    %v793 = vmax.f32 %v684, 0.0
    %v794 = vmax.f32 %v688, 0.0
    %v795 = vmax.f32 %v690, 0.0
    %v796 = vmax.f32 %v694, 0.0
    %v797 = vmax.f32 %v696, 0.0
    %v798 = vmax.f32 %v700, 0.0
    %v799 = vmax.f32 %v702, 0.0
    %v800 = vmax.f32 %v706, 0.0
    %v801 = vmax.f32 %v708, 0.0
    %v802 = vmax.f32 %v712, 0.0
    %v803 = vmax.f32 %v714, 0.0
    %v804 = vmax.f32 %v718, 0.0
    %v805 = vmax.f32 %v720, 0.0
    %v806 = vmax.f32 %v724, 0.0
    %v807 = vmax.f32 %v726, 0.0
    %v808 = vmax.f32 %v730, 0.0
    %v809 = vmax.f32 %v732, 0.0
    %v810 = vmax.f32 %v736, 0.0
    %v811 = vmax.f32 %v738, 0.0
    %v812 = vmax.f32 %v742, 0.0
    %v813 = vmax.f32 %v744, 0.0
    %v814 = vmax.f32 %v748, 0.0
    %v815 = vmax.f32 %v750, 0.0
    %v816 = vld [vmem:[#allocation8] sm:$0xff]
    %v817 = vld [vmem:[#allocation8 + $0x8] sm:$0xff]
    %v818 = vld [vmem:[#allocation8 + $0x10] sm:$0xff]
    %v819 = vld [vmem:[#allocation8 + $0x18] sm:$0xff]
    %v820 = vld [vmem:[#allocation8 + $0x20] sm:$0xff]
    %v821 = vld [vmem:[#allocation8 + $0x28] sm:$0xff]
    %v822 = vld [vmem:[#allocation8 + $0x30] sm:$0xff]
    %v823 = vld [vmem:[#allocation8 + $0x38] sm:$0xff]
    %v824 = vld [vmem:[#allocation8 + $0x40] sm:$0xff]
    %v825 = vld [vmem:[#allocation8 + $0x48] sm:$0xff]
    %v826 = vld [vmem:[#allocation8 + $0x50] sm:$0xff]
    %v827 = vld [vmem:[#allocation8 + $0x58] sm:$0xff]
    %v828 = vld [vmem:[#allocation8 + $0x60] sm:$0xff]
    %v829 = vld [vmem:[#allocation8 + $0x68] sm:$0xff]
    %v830 = vld [vmem:[#allocation8 + $0x70] sm:$0xff]
    %v831 = vld [vmem:[#allocation8 + $0x78] sm:$0xff]
    %v832 = vld [vmem:[#allocation8 + $0x80] sm:$0xff]
    %v833 = vld [vmem:[#allocation8 + $0x88] sm:$0xff]
    %v834 = vld [vmem:[#allocation8 + $0x90] sm:$0xff]
    %v835 = vld [vmem:[#allocation8 + $0x98] sm:$0xff]
    %v836 = vld [vmem:[#allocation8 + $0xa0] sm:$0xff]
    %v837 = vld [vmem:[#allocation8 + $0xa8] sm:$0xff]
    %v838 = vld [vmem:[#allocation8 + $0xb0] sm:$0xff]
    %v839 = vld [vmem:[#allocation8 + $0xb8] sm:$0xff]
    %v840 = vld [vmem:[#allocation8 + $0xc0] sm:$0xff]
    %v841 = vld [vmem:[#allocation8 + $0xc8] sm:$0xff]
    %v842 = vld [vmem:[#allocation8 + $0xd0] sm:$0xff]
    %v843 = vld [vmem:[#allocation8 + $0xd8] sm:$0xff]
    %v844 = vld [vmem:[#allocation8 + $0xe0] sm:$0xff]
    %v845 = vld [vmem:[#allocation8 + $0xe8] sm:$0xff]
    %v846 = vld [vmem:[#allocation8 + $0xf0] sm:$0xff]
    %v847 = vld [vmem:[#allocation8 + $0xf8] sm:$0xff]
    %848 = vmatprep.subr.mxu0 0.0
    %849 = vmatpush1.msra.mxu0 %v816
    %850 = vmatprep.subr.mxu0 0.0
    %851 = vmatpush1.msra.mxu0 %v817
    %852 = vmatprep.subr.mxu0 0.0
    %853 = vmatpush1.msra.mxu0 %v818
    %854 = vmatprep.subr.mxu0 0.0
    %855 = vmatpush1.msra.mxu0 %v819
    %856 = vmatprep.subr.mxu0 0.0
    %857 = vmatpush1.msra.mxu0 %v820
    %858 = vmatprep.subr.mxu0 0.0
    %859 = vmatpush1.msra.mxu0 %v821
    %860 = vmatprep.subr.mxu0 0.0
    %861 = vmatpush1.msra.mxu0 %v822
    %862 = vmatprep.subr.mxu0 0.0
    %863 = vmatpush1.msra.mxu0 %v823
    %864 = vmatprep.subr.mxu0 0.0
    %865 = vmatpush1.msra.mxu0 %v824
    %866 = vmatprep.subr.mxu0 0.0
    %867 = vmatpush1.msra.mxu0 %v825
    %868 = vmatprep.subr.mxu0 0.0
    %869 = vmatpush1.msra.mxu0 %v826
    %870 = vmatprep.subr.mxu0 0.0
    %871 = vmatpush1.msra.mxu0 %v827
    %872 = vmatprep.subr.mxu0 0.0
    %873 = vmatpush1.msra.mxu0 %v828
    %874 = vmatprep.subr.mxu0 0.0
    %875 = vmatpush1.msra.mxu0 %v829
    %876 = vmatprep.subr.mxu0 0.0
    %877 = vmatpush1.msra.mxu0 %v830
    %878 = vmatprep.subr.mxu0 0.0
    %879 = vmatpush1.msra.mxu0 %v831
    %880 = vmatprep.subr.mxu0 0.0
    %881 = vmatpush1.msra.mxu0 %v832
    %882 = vmatprep.subr.mxu0 0.0
    %883 = vmatpush1.msra.mxu0 %v833
    %884 = vmatprep.subr.mxu0 0.0
    %885 = vmatpush1.msra.mxu0 %v834
    %886 = vmatprep.subr.mxu0 0.0
    %887 = vmatpush1.msra.mxu0 %v835
    %888 = vmatprep.subr.mxu0 0.0
    %889 = vmatpush1.msra.mxu0 %v836
    %890 = vmatprep.subr.mxu0 0.0
    %891 = vmatpush1.msra.mxu0 %v837
    %892 = vmatprep.subr.mxu0 0.0
    %893 = vmatpush1.msra.mxu0 %v838
    %894 = vmatprep.subr.mxu0 0.0
    %895 = vmatpush1.msra.mxu0 %v839
    %896 = vmatprep.subr.mxu0 0.0
    %897 = vmatpush1.msra.mxu0 %v840
    %898 = vmatprep.subr.mxu0 0.0
    %899 = vmatpush1.msra.mxu0 %v841
    %900 = vmatprep.subr.mxu0 0.0
    %901 = vmatpush1.msra.mxu0 %v842
    %902 = vmatprep.subr.mxu0 0.0
    %903 = vmatpush1.msra.mxu0 %v843
    %904 = vmatprep.subr.mxu0 0.0
    %905 = vmatpush1.msra.mxu0 %v844
    %906 = vmatprep.subr.mxu0 0.0
    %907 = vmatpush1.msra.mxu0 %v845
    %908 = vmatprep.subr.mxu0 0.0
    %909 = vmatpush1.msra.mxu0 %v846
    %910 = vmatprep.subr.mxu0 0.0
    %911 = vmatpush1.msra.mxu0 %v847
    %912 = vmatprep.mubr.f32.mxu0 %v753
    %913 = vmatmul.mubr.f32.gmra.mrb[0].mxu0 %v752
    %v914 = vpop.f32.mrb[0].mxu0
    %v915 = vadd.f32 0.0, %v914
    %v916 = vpop.f32.mrb[0].mxu0
    %917 = vmatprep.mubr.f32.mxu0 %v755
    %918 = vmatmul.mubr.f32.gmra.mrb[0].mxu0 %v754
    %v919 = vpop.f32.mrb[0].mxu0
    %v920 = vadd.f32 0.0, %v919
    %v921 = vpop.f32.mrb[0].mxu0
    %922 = vmatprep.mubr.f32.mxu0 %v757
    %923 = vmatmul.mubr.f32.gmra.mrb[0].mxu0 %v756
    %v924 = vpop.f32.mrb[0].mxu0
    %v925 = vadd.f32 0.0, %v924
    %v926 = vpop.f32.mrb[0].mxu0
    %927 = vmatprep.mubr.f32.mxu0 %v759
    %928 = vmatmul.mubr.f32.gmra.mrb[0].mxu0 %v758
    %v929 = vpop.f32.mrb[0].mxu0
    %v930 = vadd.f32 0.0, %v929
    %v931 = vpop.f32.mrb[0].mxu0
    %932 = vmatprep.mubr.f32.mxu0 %v761
    %933 = vmatmul.mubr.f32.gmra.mrb[0].mxu0 %v760
    %v934 = vpop.f32.mrb[0].mxu0
    %v935 = vadd.f32 0.0, %v934
    %v936 = vpop.f32.mrb[0].mxu0
    %937 = vmatprep.mubr.f32.mxu0 %v763
    %938 = vmatmul.mubr.f32.gmra.mrb[0].mxu0 %v762
    %v939 = vpop.f32.mrb[0].mxu0
    %v940 = vadd.f32 0.0, %v939
    %v941 = vpop.f32.mrb[0].mxu0
    %942 = vmatprep.mubr.f32.mxu0 %v765
    %943 = vmatmul.mubr.f32.gmra.mrb[0].mxu0 %v764
    %v944 = vpop.f32.mrb[0].mxu0
    %v945 = vadd.f32 0.0, %v944
    %v946 = vpop.f32.mrb[0].mxu0
    %947 = vmatprep.mubr.f32.mxu0 %v767
    %948 = vmatmul.mubr.f32.gmra.mrb[0].mxu0 %v766
    %v949 = vpop.f32.mrb[0].mxu0
    %v950 = vadd.f32 0.0, %v949
    %v951 = vpop.f32.mrb[0].mxu0
    %952 = vmatprep.mubr.f32.mxu0 %v769
    %953 = vmatmul.mubr.f32.gmra.mrb[0].mxu0 %v768
    %v954 = vpop.f32.mrb[0].mxu0
    %v955 = vadd.f32 0.0, %v954
    %v956 = vpop.f32.mrb[0].mxu0
    %957 = vmatprep.mubr.f32.mxu0 %v771
    %958 = vmatmul.mubr.f32.gmra.mrb[0].mxu0 %v770
    %v959 = vpop.f32.mrb[0].mxu0
    %v960 = vadd.f32 0.0, %v959
    %v961 = vpop.f32.mrb[0].mxu0
    %962 = vmatprep.mubr.f32.mxu0 %v773
    %963 = vmatmul.mubr.f32.gmra.mrb[0].mxu0 %v772
    %v964 = vpop.f32.mrb[0].mxu0
    %v965 = vadd.f32 0.0, %v964
    %v966 = vpop.f32.mrb[0].mxu0
    %967 = vmatprep.mubr.f32.mxu0 %v775
    %968 = vmatmul.mubr.f32.gmra.mrb[0].mxu0 %v774
    %v969 = vpop.f32.mrb[0].mxu0
    %v970 = vadd.f32 0.0, %v969
    %v971 = vpop.f32.mrb[0].mxu0
    %972 = vmatprep.mubr.f32.mxu0 %v777
    %973 = vmatmul.mubr.f32.gmra.mrb[0].mxu0 %v776
    %v974 = vpop.f32.mrb[0].mxu0
    %v975 = vadd.f32 0.0, %v974
    %v976 = vpop.f32.mrb[0].mxu0
    %977 = vmatprep.mubr.f32.mxu0 %v779
    %978 = vmatmul.mubr.f32.gmra.mrb[0].mxu0 %v778
    %v979 = vpop.f32.mrb[0].mxu0
    %v980 = vadd.f32 0.0, %v979
    %v981 = vpop.f32.mrb[0].mxu0
    %982 = vmatprep.mubr.f32.mxu0 %v781
    %983 = vmatmul.mubr.f32.gmra.mrb[0].mxu0 %v780
    %v984 = vpop.f32.mrb[0].mxu0
    %v985 = vadd.f32 0.0, %v984
    %v986 = vpop.f32.mrb[0].mxu0
    %987 = vmatprep.mubr.f32.mxu0 %v783
    %988 = vmatmul.mubr.f32.gmra.mrb[0].mxu0 %v782
    %v989 = vpop.f32.mrb[0].mxu0
    %v990 = vadd.f32 0.0, %v989
    %v991 = vpop.f32.mrb[0].mxu0
    %992 = vmatprep.mubr.f32.mxu0 %v785
    %993 = vmatmul.mubr.f32.gmra.mrb[0].mxu0 %v784
    %v994 = vpop.f32.mrb[0].mxu0
    %v995 = vadd.f32 0.0, %v994
    %v996 = vpop.f32.mrb[0].mxu0
    %997 = vmatprep.mubr.f32.mxu0 %v787
    %998 = vmatmul.mubr.f32.gmra.mrb[0].mxu0 %v786
    %v999 = vpop.f32.mrb[0].mxu0
    %v1000 = vadd.f32 0.0, %v999
    %v1001 = vpop.f32.mrb[0].mxu0
    %1002 = vmatprep.mubr.f32.mxu0 %v789
    %1003 = vmatmul.mubr.f32.gmra.mrb[0].mxu0 %v788
    %v1004 = vpop.f32.mrb[0].mxu0
    %v1005 = vadd.f32 0.0, %v1004
    %v1006 = vpop.f32.mrb[0].mxu0
    %1007 = vmatprep.mubr.f32.mxu0 %v791
    %1008 = vmatmul.mubr.f32.gmra.mrb[0].mxu0 %v790
    %v1009 = vpop.f32.mrb[0].mxu0
    %v1010 = vadd.f32 0.0, %v1009
    %v1011 = vpop.f32.mrb[0].mxu0
    %1012 = vmatprep.mubr.f32.mxu0 %v793
    %1013 = vmatmul.mubr.f32.gmra.mrb[0].mxu0 %v792
    %v1014 = vpop.f32.mrb[0].mxu0
    %v1015 = vadd.f32 0.0, %v1014
    %v1016 = vpop.f32.mrb[0].mxu0
    %1017 = vmatprep.mubr.f32.mxu0 %v795
    %1018 = vmatmul.mubr.f32.gmra.mrb[0].mxu0 %v794
    %v1019 = vpop.f32.mrb[0].mxu0
    %v1020 = vadd.f32 0.0, %v1019
    %v1021 = vpop.f32.mrb[0].mxu0
    %1022 = vmatprep.mubr.f32.mxu0 %v797
    %1023 = vmatmul.mubr.f32.gmra.mrb[0].mxu0 %v796
    %v1024 = vpop.f32.mrb[0].mxu0
    %v1025 = vadd.f32 0.0, %v1024
    %v1026 = vpop.f32.mrb[0].mxu0
    %1027 = vmatprep.mubr.f32.mxu0 %v799
    %1028 = vmatmul.mubr.f32.gmra.mrb[0].mxu0 %v798
    %v1029 = vpop.f32.mrb[0].mxu0
    %v1030 = vadd.f32 0.0, %v1029
    %v1031 = vpop.f32.mrb[0].mxu0
    %1032 = vmatprep.mubr.f32.mxu0 %v801
    %1033 = vmatmul.mubr.f32.gmra.mrb[0].mxu0 %v800
    %v1034 = vpop.f32.mrb[0].mxu0
    %v1035 = vadd.f32 0.0, %v1034
    %v1036 = vpop.f32.mrb[0].mxu0
    %1037 = vmatprep.mubr.f32.mxu0 %v803
    %1038 = vmatmul.mubr.f32.gmra.mrb[0].mxu0 %v802
    %v1039 = vpop.f32.mrb[0].mxu0
    %v1040 = vadd.f32 0.0, %v1039
    %v1041 = vpop.f32.mrb[0].mxu0
    %1042 = vmatprep.mubr.f32.mxu0 %v805
    %1043 = vmatmul.mubr.f32.gmra.mrb[0].mxu0 %v804
    %v1044 = vpop.f32.mrb[0].mxu0
    %v1045 = vadd.f32 0.0, %v1044
    %v1046 = vpop.f32.mrb[0].mxu0
    %1047 = vmatprep.mubr.f32.mxu0 %v807
    %1048 = vmatmul.mubr.f32.gmra.mrb[0].mxu0 %v806
    %v1049 = vpop.f32.mrb[0].mxu0
    %v1050 = vadd.f32 0.0, %v1049
    %v1051 = vpop.f32.mrb[0].mxu0
    %1052 = vmatprep.mubr.f32.mxu0 %v809
    %1053 = vmatmul.mubr.f32.gmra.mrb[0].mxu0 %v808
    %v1054 = vpop.f32.mrb[0].mxu0
    %v1055 = vadd.f32 0.0, %v1054
    %v1056 = vpop.f32.mrb[0].mxu0
    %1057 = vmatprep.mubr.f32.mxu0 %v811
    %1058 = vmatmul.mubr.f32.gmra.mrb[0].mxu0 %v810
    %v1059 = vpop.f32.mrb[0].mxu0
    %v1060 = vadd.f32 0.0, %v1059
    %v1061 = vpop.f32.mrb[0].mxu0
    %1062 = vmatprep.mubr.f32.mxu0 %v813
    %1063 = vmatmul.mubr.f32.gmra.mrb[0].mxu0 %v812
    %v1064 = vpop.f32.mrb[0].mxu0
    %v1065 = vadd.f32 0.0, %v1064
    %v1066 = vpop.f32.mrb[0].mxu0
    %1067 = vmatprep.mubr.f32.mxu0 %v815
    %1068 = vmatmul.mubr.f32.gmra.mrb[0].mxu0 %v814
    %v1069 = vpop.f32.mrb[0].mxu0
    %v1070 = vadd.f32 0.0, %v1069
    %v1071 = vpop.f32.mrb[0].mxu0
    %1072 = vdwg.mxu0
    %v1073 = vld [vmem:[%s5] sm:$0x1]
    %v1075 = vlaneseq
    %v1076 = vshrl.u32 %v1075, 7
    %v1077 = vsub.s32 0, %v1076
    %v1078 = vrot.slane %v1073, %v1077
    %1080 = vmatprep.subr.mxu0 0.0
    %1081 = vmatpush1.msra.mxu0 %v915
    %1082 = vmatprep.subr.mxu0 0.0
    %1083 = vmatpush1.msra.mxu0 %v920
    %1084 = vmatprep.subr.mxu0 0.0
    %1085 = vmatpush1.msra.mxu0 %v925
    %1086 = vmatprep.subr.mxu0 0.0
    %1087 = vmatpush1.msra.mxu0 %v930
    %1088 = vmatprep.subr.mxu0 0.0
    %1089 = vmatpush1.msra.mxu0 %v935
    %1090 = vmatprep.subr.mxu0 0.0
    %1091 = vmatpush1.msra.mxu0 %v940
    %1092 = vmatprep.subr.mxu0 0.0
    %1093 = vmatpush1.msra.mxu0 %v945
    %1094 = vmatprep.subr.mxu0 0.0
    %1095 = vmatpush1.msra.mxu0 %v950
    %1096 = vmatprep.subr.mxu0 0.0
    %1097 = vmatpush1.msra.mxu0 %v955
    %1098 = vmatprep.subr.mxu0 0.0
    %1099 = vmatpush1.msra.mxu0 %v960
    %1100 = vmatprep.subr.mxu0 0.0
    %1101 = vmatpush1.msra.mxu0 %v965
    %1102 = vmatprep.subr.mxu0 0.0
    %1103 = vmatpush1.msra.mxu0 %v970
    %1104 = vmatprep.subr.mxu0 0.0
    %1105 = vmatpush1.msra.mxu0 %v975
    %1106 = vmatprep.subr.mxu0 0.0
    %1107 = vmatpush1.msra.mxu0 %v980
    %1108 = vmatprep.subr.mxu0 0.0
    %1109 = vmatpush1.msra.mxu0 %v985
    %1110 = vmatprep.subr.mxu0 0.0
    %1111 = vmatpush1.msra.mxu0 %v990
    %1112 = vmatprep.subr.mxu0 0.0
    %1113 = vmatpush1.msra.mxu0 %v995
    %1114 = vmatprep.subr.mxu0 0.0
    %1115 = vmatpush1.msra.mxu0 %v1000
    %1116 = vmatprep.subr.mxu0 0.0
    %1117 = vmatpush1.msra.mxu0 %v1005
    %1118 = vmatprep.subr.mxu0 0.0
    %1119 = vmatpush1.msra.mxu0 %v1010
    %1120 = vmatprep.subr.mxu0 0.0
    %1121 = vmatpush1.msra.mxu0 %v1015
    %1122 = vmatprep.subr.mxu0 0.0
    %1123 = vmatpush1.msra.mxu0 %v1020
    %1124 = vmatprep.subr.mxu0 0.0
    %1125 = vmatpush1.msra.mxu0 %v1025
    %1126 = vmatprep.subr.mxu0 0.0
    %1127 = vmatpush1.msra.mxu0 %v1030
    %1128 = vmatprep.subr.mxu0 0.0
    %1129 = vmatpush1.msra.mxu0 %v1035
    %1130 = vmatprep.subr.mxu0 0.0
    %1131 = vmatpush1.msra.mxu0 %v1040
    %1132 = vmatprep.subr.mxu0 0.0
    %1133 = vmatpush1.msra.mxu0 %v1045
    %1134 = vmatprep.subr.mxu0 0.0
    %1135 = vmatpush1.msra.mxu0 %v1050
    %1136 = vmatprep.subr.mxu0 0.0
    %1137 = vmatpush1.msra.mxu0 %v1055
    %1138 = vmatprep.subr.mxu0 0.0
    %1139 = vmatpush1.msra.mxu0 %v1060
    %1140 = vmatprep.subr.mxu0 0.0
    %1141 = vmatpush1.msra.mxu0 %v1065
    %1142 = vmatprep.subr.mxu0 0.0
    %1143 = vmatpush1.msra.mxu0 %v1070
    %1144 = vmatprep.mubr.f32.mxu0 %v99
    %1145 = vmatmul.mubr.f32.gmra.mrb[0].mxu0 %v98
    %v1146 = vpop.f32.mrb[0].mxu0
    %v1147 = vadd.f32 %v1078, %v1146
    %v1148 = vpop.f32.mrb[0].mxu0
    %1149 = vmatprep.mubr.f32.mxu0 %v101
    %1150 = vmatmul.mubr.f32.gmra.mrb[0].mxu0 %v100
    %v1151 = vpop.f32.mrb[0].mxu0
    %v1152 = vadd.f32 %v1078, %v1151
    %v1153 = vpop.f32.mrb[0].mxu0
    %1154 = vmatprep.mubr.f32.mxu0 %v103
    %1155 = vmatmul.mubr.f32.gmra.mrb[0].mxu0 %v102
    %v1156 = vpop.f32.mrb[0].mxu0
    %v1157 = vadd.f32 %v1078, %v1156
    %v1158 = vpop.f32.mrb[0].mxu0
    %1159 = vmatprep.mubr.f32.mxu0 %v105
    %1160 = vmatmul.mubr.f32.gmra.mrb[0].mxu0 %v104
    %v1161 = vpop.f32.mrb[0].mxu0
    %v1162 = vadd.f32 %v1078, %v1161
    %v1163 = vpop.f32.mrb[0].mxu0
    %1164 = vmatprep.mubr.f32.mxu0 %v107
    %1165 = vmatmul.mubr.f32.gmra.mrb[0].mxu0 %v106
    %v1166 = vpop.f32.mrb[0].mxu0
    %v1167 = vadd.f32 %v1078, %v1166
    %v1168 = vpop.f32.mrb[0].mxu0
    %1169 = vmatprep.mubr.f32.mxu0 %v109
    %1170 = vmatmul.mubr.f32.gmra.mrb[0].mxu0 %v108
    %v1171 = vpop.f32.mrb[0].mxu0
    %v1172 = vadd.f32 %v1078, %v1171
    %v1173 = vpop.f32.mrb[0].mxu0
    %1174 = vmatprep.mubr.f32.mxu0 %v111
    %1175 = vmatmul.mubr.f32.gmra.mrb[0].mxu0 %v110
    %v1176 = vpop.f32.mrb[0].mxu0
    %v1177 = vadd.f32 %v1078, %v1176
    %v1178 = vpop.f32.mrb[0].mxu0
    %1179 = vmatprep.mubr.f32.mxu0 %v113
    %1180 = vmatmul.mubr.f32.gmra.mrb[0].mxu0 %v112
    %v1181 = vpop.f32.mrb[0].mxu0
    %v1182 = vadd.f32 %v1078, %v1181
    %v1183 = vpop.f32.mrb[0].mxu0
    %1184 = vmatprep.mubr.f32.mxu0 %v115
    %1185 = vmatmul.mubr.f32.gmra.mrb[0].mxu0 %v114
    %v1186 = vpop.f32.mrb[0].mxu0
    %v1187 = vadd.f32 %v1078, %v1186
    %v1188 = vpop.f32.mrb[0].mxu0
    %1189 = vmatprep.mubr.f32.mxu0 %v117
    %1190 = vmatmul.mubr.f32.gmra.mrb[0].mxu0 %v116
    %v1191 = vpop.f32.mrb[0].mxu0
    %v1192 = vadd.f32 %v1078, %v1191
    %v1193 = vpop.f32.mrb[0].mxu0
    %1194 = vmatprep.mubr.f32.mxu0 %v119
    %1195 = vmatmul.mubr.f32.gmra.mrb[0].mxu0 %v118
    %v1196 = vpop.f32.mrb[0].mxu0
    %v1197 = vadd.f32 %v1078, %v1196
    %v1198 = vpop.f32.mrb[0].mxu0
    %1199 = vmatprep.mubr.f32.mxu0 %v121
    %1200 = vmatmul.mubr.f32.gmra.mrb[0].mxu0 %v120
    %v1201 = vpop.f32.mrb[0].mxu0
    %v1202 = vadd.f32 %v1078, %v1201
    %v1203 = vpop.f32.mrb[0].mxu0
    %1204 = vmatprep.mubr.f32.mxu0 %v123
    %1205 = vmatmul.mubr.f32.gmra.mrb[0].mxu0 %v122
    %v1206 = vpop.f32.mrb[0].mxu0
    %v1207 = vadd.f32 %v1078, %v1206
    %v1208 = vpop.f32.mrb[0].mxu0
    %1209 = vmatprep.mubr.f32.mxu0 %v125
    %1210 = vmatmul.mubr.f32.gmra.mrb[0].mxu0 %v124
    %v1211 = vpop.f32.mrb[0].mxu0
    %v1212 = vadd.f32 %v1078, %v1211
    %v1213 = vpop.f32.mrb[0].mxu0
    %1214 = vmatprep.mubr.f32.mxu0 %v127
    %1215 = vmatmul.mubr.f32.gmra.mrb[0].mxu0 %v126
    %v1216 = vpop.f32.mrb[0].mxu0
    %v1217 = vadd.f32 %v1078, %v1216
    %v1218 = vpop.f32.mrb[0].mxu0
    %1219 = vmatprep.mubr.f32.mxu0 %v129
    %1220 = vmatmul.mubr.f32.gmra.mrb[0].mxu0 %v128
    %v1221 = vpop.f32.mrb[0].mxu0
    %v1222 = vadd.f32 %v1078, %v1221
    %v1223 = vpop.f32.mrb[0].mxu0
    %1224 = vmatprep.mubr.f32.mxu0 %v131
    %1225 = vmatmul.mubr.f32.gmra.mrb[0].mxu0 %v130
    %v1226 = vpop.f32.mrb[0].mxu0
    %v1227 = vadd.f32 %v1078, %v1226
    %v1228 = vpop.f32.mrb[0].mxu0
    %1229 = vmatprep.mubr.f32.mxu0 %v133
    %1230 = vmatmul.mubr.f32.gmra.mrb[0].mxu0 %v132
    %v1231 = vpop.f32.mrb[0].mxu0
    %v1232 = vadd.f32 %v1078, %v1231
    %v1233 = vpop.f32.mrb[0].mxu0
    %1234 = vmatprep.mubr.f32.mxu0 %v135
    %1235 = vmatmul.mubr.f32.gmra.mrb[0].mxu0 %v134
    %v1236 = vpop.f32.mrb[0].mxu0
    %v1237 = vadd.f32 %v1078, %v1236
    %v1238 = vpop.f32.mrb[0].mxu0
    %1239 = vmatprep.mubr.f32.mxu0 %v137
    %1240 = vmatmul.mubr.f32.gmra.mrb[0].mxu0 %v136
    %v1241 = vpop.f32.mrb[0].mxu0
    %v1242 = vadd.f32 %v1078, %v1241
    %v1243 = vpop.f32.mrb[0].mxu0
    %1244 = vmatprep.mubr.f32.mxu0 %v139
    %1245 = vmatmul.mubr.f32.gmra.mrb[0].mxu0 %v138
    %v1246 = vpop.f32.mrb[0].mxu0
    %v1247 = vadd.f32 %v1078, %v1246
    %v1248 = vpop.f32.mrb[0].mxu0
    %1249 = vmatprep.mubr.f32.mxu0 %v141
    %1250 = vmatmul.mubr.f32.gmra.mrb[0].mxu0 %v140
    %v1251 = vpop.f32.mrb[0].mxu0
    %v1252 = vadd.f32 %v1078, %v1251
    %v1253 = vpop.f32.mrb[0].mxu0
    %1254 = vmatprep.mubr.f32.mxu0 %v143
    %1255 = vmatmul.mubr.f32.gmra.mrb[0].mxu0 %v142
    %v1256 = vpop.f32.mrb[0].mxu0
    %v1257 = vadd.f32 %v1078, %v1256
    %v1258 = vpop.f32.mrb[0].mxu0
    %1259 = vmatprep.mubr.f32.mxu0 %v145
    %1260 = vmatmul.mubr.f32.gmra.mrb[0].mxu0 %v144
    %v1261 = vpop.f32.mrb[0].mxu0
    %v1262 = vadd.f32 %v1078, %v1261
    %v1263 = vpop.f32.mrb[0].mxu0
    %1264 = vmatprep.mubr.f32.mxu0 %v147
    %1265 = vmatmul.mubr.f32.gmra.mrb[0].mxu0 %v146
    %v1266 = vpop.f32.mrb[0].mxu0
    %v1267 = vadd.f32 %v1078, %v1266
    %v1268 = vpop.f32.mrb[0].mxu0
    %1269 = vmatprep.mubr.f32.mxu0 %v149
    %1270 = vmatmul.mubr.f32.gmra.mrb[0].mxu0 %v148
    %v1271 = vpop.f32.mrb[0].mxu0
    %v1272 = vadd.f32 %v1078, %v1271
    %v1273 = vpop.f32.mrb[0].mxu0
    %1274 = vmatprep.mubr.f32.mxu0 %v151
    %1275 = vmatmul.mubr.f32.gmra.mrb[0].mxu0 %v150
    %v1276 = vpop.f32.mrb[0].mxu0
    %v1277 = vadd.f32 %v1078, %v1276
    %v1278 = vpop.f32.mrb[0].mxu0
    %1279 = vmatprep.mubr.f32.mxu0 %v153
    %1280 = vmatmul.mubr.f32.gmra.mrb[0].mxu0 %v152
    %v1281 = vpop.f32.mrb[0].mxu0
    %v1282 = vadd.f32 %v1078, %v1281
    %v1283 = vpop.f32.mrb[0].mxu0
    %1284 = vmatprep.mubr.f32.mxu0 %v155
    %1285 = vmatmul.mubr.f32.gmra.mrb[0].mxu0 %v154
    %v1286 = vpop.f32.mrb[0].mxu0
    %v1287 = vadd.f32 %v1078, %v1286
    %v1288 = vpop.f32.mrb[0].mxu0
    %1289 = vmatprep.mubr.f32.mxu0 %v157
    %1290 = vmatmul.mubr.f32.gmra.mrb[0].mxu0 %v156
    %v1291 = vpop.f32.mrb[0].mxu0
    %v1292 = vadd.f32 %v1078, %v1291
    %v1293 = vpop.f32.mrb[0].mxu0
    %1294 = vmatprep.mubr.f32.mxu0 %v159
    %1295 = vmatmul.mubr.f32.gmra.mrb[0].mxu0 %v158
    %v1296 = vpop.f32.mrb[0].mxu0
    %v1297 = vadd.f32 %v1078, %v1296
    %v1298 = vpop.f32.mrb[0].mxu0
    %1299 = vmatprep.mubr.f32.mxu0 %v161
    %1300 = vmatmul.mubr.f32.gmra.mrb[0].mxu0 %v160
    %v1301 = vpop.f32.mrb[0].mxu0
    %v1302 = vadd.f32 %v1078, %v1301
    %v1303 = vpop.f32.mrb[0].mxu0
    %1304 = vdwg.mxu0
    %v1305 = vmax.f32 %v1147, 0.0
    %v1306 = vmax.f32 %v1152, 0.0
    %v1307 = vmax.f32 %v1157, 0.0
    %v1308 = vmax.f32 %v1162, 0.0
    %v1309 = vmax.f32 %v1167, 0.0
    %v1310 = vmax.f32 %v1172, 0.0
    %v1311 = vmax.f32 %v1177, 0.0
    %v1312 = vmax.f32 %v1182, 0.0
    %v1313 = vmax.f32 %v1187, 0.0
    %v1314 = vmax.f32 %v1192, 0.0
    %v1315 = vmax.f32 %v1197, 0.0
    %v1316 = vmax.f32 %v1202, 0.0
    %v1317 = vmax.f32 %v1207, 0.0
    %v1318 = vmax.f32 %v1212, 0.0
    %v1319 = vmax.f32 %v1217, 0.0
    %v1320 = vmax.f32 %v1222, 0.0
    %v1321 = vmax.f32 %v1227, 0.0
    %v1322 = vmax.f32 %v1232, 0.0
    %v1323 = vmax.f32 %v1237, 0.0
    %v1324 = vmax.f32 %v1242, 0.0
    %v1325 = vmax.f32 %v1247, 0.0
    %v1326 = vmax.f32 %v1252, 0.0
    %v1327 = vmax.f32 %v1257, 0.0
    %v1328 = vmax.f32 %v1262, 0.0
    %v1329 = vmax.f32 %v1267, 0.0
    %v1330 = vmax.f32 %v1272, 0.0
    %v1331 = vmax.f32 %v1277, 0.0
    %v1332 = vmax.f32 %v1282, 0.0
    %v1333 = vmax.f32 %v1287, 0.0
    %v1334 = vmax.f32 %v1292, 0.0
    %v1335 = vmax.f32 %v1297, 0.0
    %v1336 = vmax.f32 %v1302, 0.0
    %v1337 = vld [vmem:[#allocation10] sm:$0xff]
    %v1338 = vld [vmem:[#allocation10 + $0x8] sm:$0xff]
    %v1339 = vld [vmem:[#allocation10 + $0x10] sm:$0xff]
    %v1340 = vld [vmem:[#allocation10 + $0x18] sm:$0xff]
    %v1341 = vld [vmem:[#allocation10 + $0x20] sm:$0xff]
    %v1342 = vld [vmem:[#allocation10 + $0x28] sm:$0xff]
    %v1343 = vld [vmem:[#allocation10 + $0x30] sm:$0xff]
    %v1344 = vld [vmem:[#allocation10 + $0x38] sm:$0xff]
    %v1345 = vld [vmem:[#allocation10 + $0x40] sm:$0xff]
    %v1346 = vld [vmem:[#allocation10 + $0x48] sm:$0xff]
    %v1347 = vld [vmem:[#allocation10 + $0x50] sm:$0xff]
    %v1348 = vld [vmem:[#allocation10 + $0x58] sm:$0xff]
    %v1349 = vld [vmem:[#allocation10 + $0x60] sm:$0xff]
    %v1350 = vld [vmem:[#allocation10 + $0x68] sm:$0xff]
    %v1351 = vld [vmem:[#allocation10 + $0x70] sm:$0xff]
    %v1352 = vld [vmem:[#allocation10 + $0x78] sm:$0xff]
    %1353 = vmatprep.subr.mxu0 0.0
    %1354 = vmatpush1.msra.mxu0 %v1337
    %1355 = vmatprep.subr.mxu0 0.0
    %1356 = vmatpush1.msra.mxu0 %v1338
    %1357 = vmatprep.subr.mxu0 0.0
    %1358 = vmatpush1.msra.mxu0 %v1339
    %1359 = vmatprep.subr.mxu0 0.0
    %1360 = vmatpush1.msra.mxu0 %v1340
    %1361 = vmatprep.subr.mxu0 0.0
    %1362 = vmatpush1.msra.mxu0 %v1341
    %1363 = vmatprep.subr.mxu0 0.0
    %1364 = vmatpush1.msra.mxu0 %v1342
    %1365 = vmatprep.subr.mxu0 0.0
    %1366 = vmatpush1.msra.mxu0 %v1343
    %1367 = vmatprep.subr.mxu0 0.0
    %1368 = vmatpush1.msra.mxu0 %v1344
    %1369 = vmatprep.subr.mxu0 0.0
    %1370 = vmatpush1.msra.mxu0 %v1345
    %1371 = vmatprep.subr.mxu0 0.0
    %1372 = vmatpush1.msra.mxu0 %v1346
    %1373 = vmatprep.subr.mxu0 0.0
    %1374 = vmatpush1.msra.mxu0 %v1347
    %1375 = vmatprep.subr.mxu0 0.0
    %1376 = vmatpush1.msra.mxu0 %v1348
    %1377 = vmatprep.subr.mxu0 0.0
    %1378 = vmatpush1.msra.mxu0 %v1349
    %1379 = vmatprep.subr.mxu0 0.0
    %1380 = vmatpush1.msra.mxu0 %v1350
    %1381 = vmatprep.subr.mxu0 0.0
    %1382 = vmatpush1.msra.mxu0 %v1351
    %1383 = vmatprep.subr.mxu0 0.0
    %1384 = vmatpush1.msra.mxu0 %v1352
    %1385 = vmatprep.subr.mxu0 0.0
    %1386 = vmatpush1.msra.mxu0 0.0
    %1387 = vmatprep.subr.mxu0 0.0
    %1388 = vmatpush1.msra.mxu0 0.0
    %1389 = vmatprep.subr.mxu0 0.0
    %1390 = vmatpush1.msra.mxu0 0.0
    %1391 = vmatprep.subr.mxu0 0.0
    %1392 = vmatpush1.msra.mxu0 0.0
    %1393 = vmatprep.subr.mxu0 0.0
    %1394 = vmatpush1.msra.mxu0 0.0
    %1395 = vmatprep.subr.mxu0 0.0
    %1396 = vmatpush1.msra.mxu0 0.0
    %1397 = vmatprep.subr.mxu0 0.0
    %1398 = vmatpush1.msra.mxu0 0.0
    %1399 = vmatprep.subr.mxu0 0.0
    %1400 = vmatpush1.msra.mxu0 0.0
    %1401 = vmatprep.subr.mxu0 0.0
    %1402 = vmatpush1.msra.mxu0 0.0
    %1403 = vmatprep.subr.mxu0 0.0
    %1404 = vmatpush1.msra.mxu0 0.0
    %1405 = vmatprep.subr.mxu0 0.0
    %1406 = vmatpush1.msra.mxu0 0.0
    %1407 = vmatprep.subr.mxu0 0.0
    %1408 = vmatpush1.msra.mxu0 0.0
    %1409 = vmatprep.subr.mxu0 0.0
    %1410 = vmatpush1.msra.mxu0 0.0
    %1411 = vmatprep.subr.mxu0 0.0
    %1412 = vmatpush1.msra.mxu0 0.0
    %1413 = vmatprep.subr.mxu0 0.0
    %1414 = vmatpush1.msra.mxu0 0.0
    %1415 = vmatprep.subr.mxu0 0.0
    %1416 = vmatpush1.msra.mxu0 0.0
    %1417 = vmatprep.mubr.f32.mxu0 0.0
    %1418 = vmatmul.mubr.f32.gmra.mrb[0].mxu0 %v1305
    %v1419 = vpop.f32.mrb[0].mxu0
    %v1420 = vadd.f32 0.0, %v1419
    %v1421 = vpop.f32.mrb[0].mxu0
    %1422 = vmatprep.mubr.f32.mxu0 0.0
    %1423 = vmatmul.mubr.f32.gmra.mrb[0].mxu0 %v1306
    %v1424 = vpop.f32.mrb[0].mxu0
    %v1425 = vadd.f32 0.0, %v1424
    %v1426 = vpop.f32.mrb[0].mxu0
    %1427 = vmatprep.mubr.f32.mxu0 0.0
    %1428 = vmatmul.mubr.f32.gmra.mrb[0].mxu0 %v1307
    %v1429 = vpop.f32.mrb[0].mxu0
    %v1430 = vadd.f32 0.0, %v1429
    %v1431 = vpop.f32.mrb[0].mxu0
    %1432 = vmatprep.mubr.f32.mxu0 0.0
    %1433 = vmatmul.mubr.f32.gmra.mrb[0].mxu0 %v1308
    %v1434 = vpop.f32.mrb[0].mxu0
    %v1435 = vadd.f32 0.0, %v1434
    %v1436 = vpop.f32.mrb[0].mxu0
    %1437 = vmatprep.mubr.f32.mxu0 0.0
    %1438 = vmatmul.mubr.f32.gmra.mrb[0].mxu0 %v1309
    %v1439 = vpop.f32.mrb[0].mxu0
    %v1440 = vadd.f32 0.0, %v1439
    %v1441 = vpop.f32.mrb[0].mxu0
    %1442 = vmatprep.mubr.f32.mxu0 0.0
    %1443 = vmatmul.mubr.f32.gmra.mrb[0].mxu0 %v1310
    %v1444 = vpop.f32.mrb[0].mxu0
    %v1445 = vadd.f32 0.0, %v1444
    %v1446 = vpop.f32.mrb[0].mxu0
    %1447 = vmatprep.mubr.f32.mxu0 0.0
    %1448 = vmatmul.mubr.f32.gmra.mrb[0].mxu0 %v1311
    %v1449 = vpop.f32.mrb[0].mxu0
    %v1450 = vadd.f32 0.0, %v1449
    %v1451 = vpop.f32.mrb[0].mxu0
    %1452 = vmatprep.mubr.f32.mxu0 0.0
    %1453 = vmatmul.mubr.f32.gmra.mrb[0].mxu0 %v1312
    %v1454 = vpop.f32.mrb[0].mxu0
    %v1455 = vadd.f32 0.0, %v1454
    %v1456 = vpop.f32.mrb[0].mxu0
    %1457 = vmatprep.mubr.f32.mxu0 0.0
    %1458 = vmatmul.mubr.f32.gmra.mrb[0].mxu0 %v1313
    %v1459 = vpop.f32.mrb[0].mxu0
    %v1460 = vadd.f32 0.0, %v1459
    %v1461 = vpop.f32.mrb[0].mxu0
    %1462 = vmatprep.mubr.f32.mxu0 0.0
    %1463 = vmatmul.mubr.f32.gmra.mrb[0].mxu0 %v1314
    %v1464 = vpop.f32.mrb[0].mxu0
    %v1465 = vadd.f32 0.0, %v1464
    %v1466 = vpop.f32.mrb[0].mxu0
    %1467 = vmatprep.mubr.f32.mxu0 0.0
    %1468 = vmatmul.mubr.f32.gmra.mrb[0].mxu0 %v1315
    %v1469 = vpop.f32.mrb[0].mxu0
    %v1470 = vadd.f32 0.0, %v1469
    %v1471 = vpop.f32.mrb[0].mxu0
    %1472 = vmatprep.mubr.f32.mxu0 0.0
    %1473 = vmatmul.mubr.f32.gmra.mrb[0].mxu0 %v1316
    %v1474 = vpop.f32.mrb[0].mxu0
    %v1475 = vadd.f32 0.0, %v1474
    %v1476 = vpop.f32.mrb[0].mxu0
    %1477 = vmatprep.mubr.f32.mxu0 0.0
    %1478 = vmatmul.mubr.f32.gmra.mrb[0].mxu0 %v1317
    %v1479 = vpop.f32.mrb[0].mxu0
    %v1480 = vadd.f32 0.0, %v1479
    %v1481 = vpop.f32.mrb[0].mxu0
    %1482 = vmatprep.mubr.f32.mxu0 0.0
    %1483 = vmatmul.mubr.f32.gmra.mrb[0].mxu0 %v1318
    %v1484 = vpop.f32.mrb[0].mxu0
    %v1485 = vadd.f32 0.0, %v1484
    %v1486 = vpop.f32.mrb[0].mxu0
    %1487 = vmatprep.mubr.f32.mxu0 0.0
    %1488 = vmatmul.mubr.f32.gmra.mrb[0].mxu0 %v1319
    %v1489 = vpop.f32.mrb[0].mxu0
    %v1490 = vadd.f32 0.0, %v1489
    %v1491 = vpop.f32.mrb[0].mxu0
    %1492 = vmatprep.mubr.f32.mxu0 0.0
    %1493 = vmatmul.mubr.f32.gmra.mrb[0].mxu0 %v1320
    %v1494 = vpop.f32.mrb[0].mxu0
    %v1495 = vadd.f32 0.0, %v1494
    %v1496 = vpop.f32.mrb[0].mxu0
    %1497 = vmatprep.mubr.f32.mxu0 0.0
    %1498 = vmatmul.mubr.f32.gmra.mrb[0].mxu0 %v1321
    %v1499 = vpop.f32.mrb[0].mxu0
    %v1500 = vadd.f32 0.0, %v1499
    %v1501 = vpop.f32.mrb[0].mxu0
    %1502 = vmatprep.mubr.f32.mxu0 0.0
    %1503 = vmatmul.mubr.f32.gmra.mrb[0].mxu0 %v1322
    %v1504 = vpop.f32.mrb[0].mxu0
    %v1505 = vadd.f32 0.0, %v1504
    %v1506 = vpop.f32.mrb[0].mxu0
    %1507 = vmatprep.mubr.f32.mxu0 0.0
    %1508 = vmatmul.mubr.f32.gmra.mrb[0].mxu0 %v1323
    %v1509 = vpop.f32.mrb[0].mxu0
    %v1510 = vadd.f32 0.0, %v1509
    %v1511 = vpop.f32.mrb[0].mxu0
    %1512 = vmatprep.mubr.f32.mxu0 0.0
    %1513 = vmatmul.mubr.f32.gmra.mrb[0].mxu0 %v1324
    %v1514 = vpop.f32.mrb[0].mxu0
    %v1515 = vadd.f32 0.0, %v1514
    %v1516 = vpop.f32.mrb[0].mxu0
    %1517 = vmatprep.mubr.f32.mxu0 0.0
    %1518 = vmatmul.mubr.f32.gmra.mrb[0].mxu0 %v1325
    %v1519 = vpop.f32.mrb[0].mxu0
    %v1520 = vadd.f32 0.0, %v1519
    %v1521 = vpop.f32.mrb[0].mxu0
    %1522 = vmatprep.mubr.f32.mxu0 0.0
    %1523 = vmatmul.mubr.f32.gmra.mrb[0].mxu0 %v1326
    %v1524 = vpop.f32.mrb[0].mxu0
    %v1525 = vadd.f32 0.0, %v1524
    %v1526 = vpop.f32.mrb[0].mxu0
    %1527 = vmatprep.mubr.f32.mxu0 0.0
    %1528 = vmatmul.mubr.f32.gmra.mrb[0].mxu0 %v1327
    %v1529 = vpop.f32.mrb[0].mxu0
    %v1530 = vadd.f32 0.0, %v1529
    %v1531 = vpop.f32.mrb[0].mxu0
    %1532 = vmatprep.mubr.f32.mxu0 0.0
    %1533 = vmatmul.mubr.f32.gmra.mrb[0].mxu0 %v1328
    %v1534 = vpop.f32.mrb[0].mxu0
    %v1535 = vadd.f32 0.0, %v1534
    %v1536 = vpop.f32.mrb[0].mxu0
    %1537 = vmatprep.mubr.f32.mxu0 0.0
    %1538 = vmatmul.mubr.f32.gmra.mrb[0].mxu0 %v1329
    %v1539 = vpop.f32.mrb[0].mxu0
    %v1540 = vadd.f32 0.0, %v1539
    %v1541 = vpop.f32.mrb[0].mxu0
    %1542 = vmatprep.mubr.f32.mxu0 0.0
    %1543 = vmatmul.mubr.f32.gmra.mrb[0].mxu0 %v1330
    %v1544 = vpop.f32.mrb[0].mxu0
    %v1545 = vadd.f32 0.0, %v1544
    %v1546 = vpop.f32.mrb[0].mxu0
    %1547 = vmatprep.mubr.f32.mxu0 0.0
    %1548 = vmatmul.mubr.f32.gmra.mrb[0].mxu0 %v1331
    %v1549 = vpop.f32.mrb[0].mxu0
    %v1550 = vadd.f32 0.0, %v1549
    %v1551 = vpop.f32.mrb[0].mxu0
    %1552 = vmatprep.mubr.f32.mxu0 0.0
    %1553 = vmatmul.mubr.f32.gmra.mrb[0].mxu0 %v1332
    %v1554 = vpop.f32.mrb[0].mxu0
    %v1555 = vadd.f32 0.0, %v1554
    %v1556 = vpop.f32.mrb[0].mxu0
    %1557 = vmatprep.mubr.f32.mxu0 0.0
    %1558 = vmatmul.mubr.f32.gmra.mrb[0].mxu0 %v1333
    %v1559 = vpop.f32.mrb[0].mxu0
    %v1560 = vadd.f32 0.0, %v1559
    %v1561 = vpop.f32.mrb[0].mxu0
    %1562 = vmatprep.mubr.f32.mxu0 0.0
    %1563 = vmatmul.mubr.f32.gmra.mrb[0].mxu0 %v1334
    %v1564 = vpop.f32.mrb[0].mxu0
    %v1565 = vadd.f32 0.0, %v1564
    %v1566 = vpop.f32.mrb[0].mxu0
    %1567 = vmatprep.mubr.f32.mxu0 0.0
    %1568 = vmatmul.mubr.f32.gmra.mrb[0].mxu0 %v1335
    %v1569 = vpop.f32.mrb[0].mxu0
    %v1570 = vadd.f32 0.0, %v1569
    %v1571 = vpop.f32.mrb[0].mxu0
    %1572 = vmatprep.mubr.f32.mxu0 0.0
    %1573 = vmatmul.mubr.f32.gmra.mrb[0].mxu0 %v1336
    %v1574 = vpop.f32.mrb[0].mxu0
    %v1575 = vadd.f32 0.0, %v1574
    %v1576 = vpop.f32.mrb[0].mxu0
    %1577 = vdwg.mxu0
    %v1578 = vld [vmem:[%s7] sm:$0x1]
    %v1580 = vlaneseq
    %v1581 = vshrl.u32 %v1580, 7
    %v1582 = vsub.s32 0, %v1581
    %v1583 = vrot.slane %v1578, %v1582
    %1585 = vmatprep.subr.mxu0 0.0
    %1586 = vmatpush1.msra.mxu0 %v1420
    %1587 = vmatprep.subr.mxu0 0.0
    %1588 = vmatpush1.msra.mxu0 %v1425
    %1589 = vmatprep.subr.mxu0 0.0
    %1590 = vmatpush1.msra.mxu0 %v1430
    %1591 = vmatprep.subr.mxu0 0.0
    %1592 = vmatpush1.msra.mxu0 %v1435
    %1593 = vmatprep.subr.mxu0 0.0
    %1594 = vmatpush1.msra.mxu0 %v1440
    %1595 = vmatprep.subr.mxu0 0.0
    %1596 = vmatpush1.msra.mxu0 %v1445
    %1597 = vmatprep.subr.mxu0 0.0
    %1598 = vmatpush1.msra.mxu0 %v1450
    %1599 = vmatprep.subr.mxu0 0.0
    %1600 = vmatpush1.msra.mxu0 %v1455
    %1601 = vmatprep.subr.mxu0 0.0
    %1602 = vmatpush1.msra.mxu0 %v1460
    %1603 = vmatprep.subr.mxu0 0.0
    %1604 = vmatpush1.msra.mxu0 %v1465
    %1605 = vmatprep.subr.mxu0 0.0
    %1606 = vmatpush1.msra.mxu0 %v1470
    %1607 = vmatprep.subr.mxu0 0.0
    %1608 = vmatpush1.msra.mxu0 %v1475
    %1609 = vmatprep.subr.mxu0 0.0
    %1610 = vmatpush1.msra.mxu0 %v1480
    %1611 = vmatprep.subr.mxu0 0.0
    %1612 = vmatpush1.msra.mxu0 %v1485
    %1613 = vmatprep.subr.mxu0 0.0
    %1614 = vmatpush1.msra.mxu0 %v1490
    %1615 = vmatprep.subr.mxu0 0.0
    %1616 = vmatpush1.msra.mxu0 %v1495
    %1617 = vmatprep.subr.mxu0 0.0
    %1618 = vmatpush1.msra.mxu0 %v1500
    %1619 = vmatprep.subr.mxu0 0.0
    %1620 = vmatpush1.msra.mxu0 %v1505
    %1621 = vmatprep.subr.mxu0 0.0
    %1622 = vmatpush1.msra.mxu0 %v1510
    %1623 = vmatprep.subr.mxu0 0.0
    %1624 = vmatpush1.msra.mxu0 %v1515
    %1625 = vmatprep.subr.mxu0 0.0
    %1626 = vmatpush1.msra.mxu0 %v1520
    %1627 = vmatprep.subr.mxu0 0.0
    %1628 = vmatpush1.msra.mxu0 %v1525
    %1629 = vmatprep.subr.mxu0 0.0
    %1630 = vmatpush1.msra.mxu0 %v1530
    %1631 = vmatprep.subr.mxu0 0.0
    %1632 = vmatpush1.msra.mxu0 %v1535
    %1633 = vmatprep.subr.mxu0 0.0
    %1634 = vmatpush1.msra.mxu0 %v1540
    %1635 = vmatprep.subr.mxu0 0.0
    %1636 = vmatpush1.msra.mxu0 %v1545
    %1637 = vmatprep.subr.mxu0 0.0
    %1638 = vmatpush1.msra.mxu0 %v1550
    %1639 = vmatprep.subr.mxu0 0.0
    %1640 = vmatpush1.msra.mxu0 %v1555
    %1641 = vmatprep.subr.mxu0 0.0
    %1642 = vmatpush1.msra.mxu0 %v1560
    %1643 = vmatprep.subr.mxu0 0.0
    %1644 = vmatpush1.msra.mxu0 %v1565
    %1645 = vmatprep.subr.mxu0 0.0
    %1646 = vmatpush1.msra.mxu0 %v1570
    %1647 = vmatprep.subr.mxu0 0.0
    %1648 = vmatpush1.msra.mxu0 %v1575
    %1649 = vmatprep.mubr.f32.mxu0 %v99
    %1650 = vmatmul.mubr.f32.gmra.mrb[0].mxu0 %v98
    %v1651 = vpop.f32.mrb[0].mxu0
    %v1652 = vadd.f32 %v1583, %v1651
    %v1653 = vpop.f32.mrb[0].mxu0
    %1654 = vmatprep.mubr.f32.mxu0 %v101
    %1655 = vmatmul.mubr.f32.gmra.mrb[0].mxu0 %v100
    %v1656 = vpop.f32.mrb[0].mxu0
    %v1657 = vadd.f32 %v1583, %v1656
    %v1658 = vpop.f32.mrb[0].mxu0
    %1659 = vmatprep.mubr.f32.mxu0 %v103
    %1660 = vmatmul.mubr.f32.gmra.mrb[0].mxu0 %v102
    %v1661 = vpop.f32.mrb[0].mxu0
    %v1662 = vadd.f32 %v1583, %v1661
    %v1663 = vpop.f32.mrb[0].mxu0
    %1664 = vmatprep.mubr.f32.mxu0 %v105
    %1665 = vmatmul.mubr.f32.gmra.mrb[0].mxu0 %v104
    %v1666 = vpop.f32.mrb[0].mxu0
    %v1667 = vadd.f32 %v1583, %v1666
    %v1668 = vpop.f32.mrb[0].mxu0
    %1669 = vmatprep.mubr.f32.mxu0 %v107
    %1670 = vmatmul.mubr.f32.gmra.mrb[0].mxu0 %v106
    %v1671 = vpop.f32.mrb[0].mxu0
    %v1672 = vadd.f32 %v1583, %v1671
    %v1673 = vpop.f32.mrb[0].mxu0
    %1674 = vmatprep.mubr.f32.mxu0 %v109
    %1675 = vmatmul.mubr.f32.gmra.mrb[0].mxu0 %v108
    %v1676 = vpop.f32.mrb[0].mxu0
    %v1677 = vadd.f32 %v1583, %v1676
    %v1678 = vpop.f32.mrb[0].mxu0
    %1679 = vmatprep.mubr.f32.mxu0 %v111
    %1680 = vmatmul.mubr.f32.gmra.mrb[0].mxu0 %v110
    %v1681 = vpop.f32.mrb[0].mxu0
    %v1682 = vadd.f32 %v1583, %v1681
    %v1683 = vpop.f32.mrb[0].mxu0
    %1684 = vmatprep.mubr.f32.mxu0 %v113
    %1685 = vmatmul.mubr.f32.gmra.mrb[0].mxu0 %v112
    %v1686 = vpop.f32.mrb[0].mxu0
    %v1687 = vadd.f32 %v1583, %v1686
    %v1688 = vpop.f32.mrb[0].mxu0
    %1689 = vmatprep.mubr.f32.mxu0 %v115
    %1690 = vmatmul.mubr.f32.gmra.mrb[0].mxu0 %v114
    %v1691 = vpop.f32.mrb[0].mxu0
    %v1692 = vadd.f32 %v1583, %v1691
    %v1693 = vpop.f32.mrb[0].mxu0
    %1694 = vmatprep.mubr.f32.mxu0 %v117
    %1695 = vmatmul.mubr.f32.gmra.mrb[0].mxu0 %v116
    %v1696 = vpop.f32.mrb[0].mxu0
    %v1697 = vadd.f32 %v1583, %v1696
    %v1698 = vpop.f32.mrb[0].mxu0
    %1699 = vmatprep.mubr.f32.mxu0 %v119
    %1700 = vmatmul.mubr.f32.gmra.mrb[0].mxu0 %v118
    %v1701 = vpop.f32.mrb[0].mxu0
    %v1702 = vadd.f32 %v1583, %v1701
    %v1703 = vpop.f32.mrb[0].mxu0
    %1704 = vmatprep.mubr.f32.mxu0 %v121
    %1705 = vmatmul.mubr.f32.gmra.mrb[0].mxu0 %v120
    %v1706 = vpop.f32.mrb[0].mxu0
    %v1707 = vadd.f32 %v1583, %v1706
    %v1708 = vpop.f32.mrb[0].mxu0
    %1709 = vmatprep.mubr.f32.mxu0 %v123
    %1710 = vmatmul.mubr.f32.gmra.mrb[0].mxu0 %v122
    %v1711 = vpop.f32.mrb[0].mxu0
    %v1712 = vadd.f32 %v1583, %v1711
    %v1713 = vpop.f32.mrb[0].mxu0
    %1714 = vmatprep.mubr.f32.mxu0 %v125
    %1715 = vmatmul.mubr.f32.gmra.mrb[0].mxu0 %v124
    %v1716 = vpop.f32.mrb[0].mxu0
    %v1717 = vadd.f32 %v1583, %v1716
    %v1718 = vpop.f32.mrb[0].mxu0
    %1719 = vmatprep.mubr.f32.mxu0 %v127
    %1720 = vmatmul.mubr.f32.gmra.mrb[0].mxu0 %v126
    %v1721 = vpop.f32.mrb[0].mxu0
    %v1722 = vadd.f32 %v1583, %v1721
    %v1723 = vpop.f32.mrb[0].mxu0
    %1724 = vmatprep.mubr.f32.mxu0 %v129
    %1725 = vmatmul.mubr.f32.gmra.mrb[0].mxu0 %v128
    %v1726 = vpop.f32.mrb[0].mxu0
    %v1727 = vadd.f32 %v1583, %v1726
    %v1728 = vpop.f32.mrb[0].mxu0
    %1729 = vmatprep.mubr.f32.mxu0 %v131
    %1730 = vmatmul.mubr.f32.gmra.mrb[0].mxu0 %v130
    %v1731 = vpop.f32.mrb[0].mxu0
    %v1732 = vadd.f32 %v1583, %v1731
    %v1733 = vpop.f32.mrb[0].mxu0
    %1734 = vmatprep.mubr.f32.mxu0 %v133
    %1735 = vmatmul.mubr.f32.gmra.mrb[0].mxu0 %v132
    %v1736 = vpop.f32.mrb[0].mxu0
    %v1737 = vadd.f32 %v1583, %v1736
    %v1738 = vpop.f32.mrb[0].mxu0
    %1739 = vmatprep.mubr.f32.mxu0 %v135
    %1740 = vmatmul.mubr.f32.gmra.mrb[0].mxu0 %v134
    %v1741 = vpop.f32.mrb[0].mxu0
    %v1742 = vadd.f32 %v1583, %v1741
    %v1743 = vpop.f32.mrb[0].mxu0
    %1744 = vmatprep.mubr.f32.mxu0 %v137
    %1745 = vmatmul.mubr.f32.gmra.mrb[0].mxu0 %v136
    %v1746 = vpop.f32.mrb[0].mxu0
    %v1747 = vadd.f32 %v1583, %v1746
    %v1748 = vpop.f32.mrb[0].mxu0
    %1749 = vmatprep.mubr.f32.mxu0 %v139
    %1750 = vmatmul.mubr.f32.gmra.mrb[0].mxu0 %v138
    %v1751 = vpop.f32.mrb[0].mxu0
    %v1752 = vadd.f32 %v1583, %v1751
    %v1753 = vpop.f32.mrb[0].mxu0
    %1754 = vmatprep.mubr.f32.mxu0 %v141
    %1755 = vmatmul.mubr.f32.gmra.mrb[0].mxu0 %v140
    %v1756 = vpop.f32.mrb[0].mxu0
    %v1757 = vadd.f32 %v1583, %v1756
    %v1758 = vpop.f32.mrb[0].mxu0
    %1759 = vmatprep.mubr.f32.mxu0 %v143
    %1760 = vmatmul.mubr.f32.gmra.mrb[0].mxu0 %v142
    %v1761 = vpop.f32.mrb[0].mxu0
    %v1762 = vadd.f32 %v1583, %v1761
    %v1763 = vpop.f32.mrb[0].mxu0
    %1764 = vmatprep.mubr.f32.mxu0 %v145
    %1765 = vmatmul.mubr.f32.gmra.mrb[0].mxu0 %v144
    %v1766 = vpop.f32.mrb[0].mxu0
    %v1767 = vadd.f32 %v1583, %v1766
    %v1768 = vpop.f32.mrb[0].mxu0
    %1769 = vmatprep.mubr.f32.mxu0 %v147
    %1770 = vmatmul.mubr.f32.gmra.mrb[0].mxu0 %v146
    %v1771 = vpop.f32.mrb[0].mxu0
    %v1772 = vadd.f32 %v1583, %v1771
    %v1773 = vpop.f32.mrb[0].mxu0
    %1774 = vmatprep.mubr.f32.mxu0 %v149
    %1775 = vmatmul.mubr.f32.gmra.mrb[0].mxu0 %v148
    %v1776 = vpop.f32.mrb[0].mxu0
    %v1777 = vadd.f32 %v1583, %v1776
    %v1778 = vpop.f32.mrb[0].mxu0
    %1779 = vmatprep.mubr.f32.mxu0 %v151
    %1780 = vmatmul.mubr.f32.gmra.mrb[0].mxu0 %v150
    %v1781 = vpop.f32.mrb[0].mxu0
    %v1782 = vadd.f32 %v1583, %v1781
    %v1783 = vpop.f32.mrb[0].mxu0
    %1784 = vmatprep.mubr.f32.mxu0 %v153
    %1785 = vmatmul.mubr.f32.gmra.mrb[0].mxu0 %v152
    %v1786 = vpop.f32.mrb[0].mxu0
    %v1787 = vadd.f32 %v1583, %v1786
    %v1788 = vpop.f32.mrb[0].mxu0
    %1789 = vmatprep.mubr.f32.mxu0 %v155
    %1790 = vmatmul.mubr.f32.gmra.mrb[0].mxu0 %v154
    %v1791 = vpop.f32.mrb[0].mxu0
    %v1792 = vadd.f32 %v1583, %v1791
    %v1793 = vpop.f32.mrb[0].mxu0
    %1794 = vmatprep.mubr.f32.mxu0 %v157
    %1795 = vmatmul.mubr.f32.gmra.mrb[0].mxu0 %v156
    %v1796 = vpop.f32.mrb[0].mxu0
    %v1797 = vadd.f32 %v1583, %v1796
    %v1798 = vpop.f32.mrb[0].mxu0
    %1799 = vmatprep.mubr.f32.mxu0 %v159
    %1800 = vmatmul.mubr.f32.gmra.mrb[0].mxu0 %v158
    %v1801 = vpop.f32.mrb[0].mxu0
    %v1802 = vadd.f32 %v1583, %v1801
    %v1803 = vpop.f32.mrb[0].mxu0
    %1804 = vmatprep.mubr.f32.mxu0 %v161
    %1805 = vmatmul.mubr.f32.gmra.mrb[0].mxu0 %v160
    %v1806 = vpop.f32.mrb[0].mxu0
    %v1807 = vadd.f32 %v1583, %v1806
    %v1808 = vpop.f32.mrb[0].mxu0
    %1809 = vdwg.mxu0
    %1810 = vst [vmem:[#allocation11] sm:$0xff] %v1652
    %1811 = vst [vmem:[#allocation11 + $0x8] sm:$0xff] %v1657
    %1812 = vst [vmem:[#allocation11 + $0x10] sm:$0xff] %v1662
    %1813 = vst [vmem:[#allocation11 + $0x18] sm:$0xff] %v1667
    %1814 = vst [vmem:[#allocation11 + $0x20] sm:$0xff] %v1672
    %1815 = vst [vmem:[#allocation11 + $0x28] sm:$0xff] %v1677
    %1816 = vst [vmem:[#allocation11 + $0x30] sm:$0xff] %v1682
    %1817 = vst [vmem:[#allocation11 + $0x38] sm:$0xff] %v1687
    %1818 = vst [vmem:[#allocation11 + $0x40] sm:$0xff] %v1692
    %1819 = vst [vmem:[#allocation11 + $0x48] sm:$0xff] %v1697
    %1820 = vst [vmem:[#allocation11 + $0x50] sm:$0xff] %v1702
    %1821 = vst [vmem:[#allocation11 + $0x58] sm:$0xff] %v1707
    %1822 = vst [vmem:[#allocation11 + $0x60] sm:$0xff] %v1712
    %1823 = vst [vmem:[#allocation11 + $0x68] sm:$0xff] %v1717
    %1824 = vst [vmem:[#allocation11 + $0x70] sm:$0xff] %v1722
    %1825 = vst [vmem:[#allocation11 + $0x78] sm:$0xff] %v1727
    %1826 = vst [vmem:[#allocation11 + $0x80] sm:$0xff] %v1732
    %1827 = vst [vmem:[#allocation11 + $0x88] sm:$0xff] %v1737
    %1828 = vst [vmem:[#allocation11 + $0x90] sm:$0xff] %v1742
    %1829 = vst [vmem:[#allocation11 + $0x98] sm:$0xff] %v1747
    %1830 = vst [vmem:[#allocation11 + $0xa0] sm:$0xff] %v1752
    %1831 = vst [vmem:[#allocation11 + $0xa8] sm:$0xff] %v1757
    %1832 = vst [vmem:[#allocation11 + $0xb0] sm:$0xff] %v1762
    %1833 = vst [vmem:[#allocation11 + $0xb8] sm:$0xff] %v1767
    %1834 = vst [vmem:[#allocation11 + $0xc0] sm:$0xff] %v1772
    %1835 = vst [vmem:[#allocation11 + $0xc8] sm:$0xff] %v1777
    %1836 = vst [vmem:[#allocation11 + $0xd0] sm:$0xff] %v1782
    %1837 = vst [vmem:[#allocation11 + $0xd8] sm:$0xff] %v1787
    %1838 = vst [vmem:[#allocation11 + $0xe0] sm:$0xff] %v1792
    %1839 = vst [vmem:[#allocation11 + $0xe8] sm:$0xff] %v1797
    %1840 = vst [vmem:[#allocation11 + $0xf0] sm:$0xff] %v1802
    %1841 = vst [vmem:[#allocation11 + $0xf8] sm:$0xff] %v1807
    // Predicated region
    $region54: #{tpu_custom_call.1} parent=1 // pred_check
      _
    $region55: #{tpu_custom_call.1} parent=1 // pred_check_branch
      %1843 = sbr.rel (0) target = $region57
    $region56: #{tpu_custom_call.1} parent=1 // pred_region
      %s1845 = ssub.s32 4096, 4096
      %1846 = vsyncadd [#allocation4], %s1845
      %s1847 = sshll.u32 [#allocation11], 4
      %s1848 = int_to_ptr.vmem [resolvable:$true] %s1847
      %1853 = dma.vmem_to_hbm [thread:$0]  %s1848, 4096, %s8, [#allocation4], 128, 128, 8
    $region57: #{tpu_custom_call.1} parent=1 // pred_fallthru
      _
    // Predicated region
    $region58: #{tpu_custom_call.1} parent=1 // pred_check
      _
    $region59: #{tpu_custom_call.1} parent=1 // pred_check_branch
      %1855 = sbr.rel (0) target = $region61
    $region60: #{tpu_custom_call.1} parent=1 // pred_region
      %1856 = dma.done [#allocation4], 4096
    $region61: #{tpu_custom_call.1} parent=1 // pred_fallthru
      _
    %1857 = vsyncpa [#allocation3], 1
    %1858 = vsyncpa [#allocation6], 1
    %1859 = vsyncpa [#allocation9], 1
    %1860 = vsyncpa [#allocation4], 1

</llo_original>
